<compile_context>
chip_gen: v7x
topology: tpu7x:2x2x1
jax: 0.10.0
libtpu: 0.0.40
codegen_flags: <defaults>
</compile_context>

<pallas_src>
import numpy as np
import jax
import jax.numpy as jnp
from jax import lax
from jax.experimental import pallas as pl
from jax.experimental.pallas import tpu as pltpu


# ----------------------------------------------------------------------------
# Kernels (single big-K matmul + fused epilogue; no in-kernel slices/reshapes)
# ----------------------------------------------------------------------------
def _mm_bias_lrelu_kernel(x_ref, w_ref, b_ref, o_ref):
    """One conv layer: o = LeakyReLU_0.2(x @ w + b).

    x_ref: (TM, G*16*Cin)     bf16  grouped im2col rows (G output pixels / row)
    w_ref: (G*16*Cin, G*Cout) bf16  block-diagonal kron(I_G, W)
    b_ref: (1, G*Cout)        f32
    o_ref: (TM, G*Cout)       bf16  lane-dense output slab (G*Cout == 128 here)
    """
    acc = jnp.dot(x_ref[...], w_ref[...], preferred_element_type=jnp.float32)
    acc = acc + b_ref[...]
    o_ref[...] = jnp.where(acc >= 0.0, acc, 0.2 * acc).astype(o_ref.dtype)


def _mm_bias_lrelu_head_kernel(x_ref, w_ref, b_ref, wf_ref, bf_ref, o_ref):
    """Last conv layer fused with the 1x1 OutConv head.

    wf_ref: (G*Cout, G) bf16  block-diagonal kron(I_G, w_final)
    bf_ref: (1, G)      f32
    o_ref:  (TM, G)     f32   one logit per packed output pixel
    """
    acc = jnp.dot(x_ref[...], w_ref[...], preferred_element_type=jnp.float32)
    acc = acc + b_ref[...]
    acc = jnp.where(acc >= 0.0, acc, 0.2 * acc)
    o_ref[...] = (jnp.dot(acc.astype(wf_ref.dtype), wf_ref[...],
                          preferred_element_type=jnp.float32) + bf_ref[...])


# ----------------------------------------------------------------------------
# Wrapper-side layout glue (XLA does this once, outside the kernels)
# ----------------------------------------------------------------------------
def _lane_group(m_rows, c_out):
    """Number of output pixels packed per 128-lane output row."""
    if c_out >= 128 or 128 % c_out != 0:
        return 1
    g = 128 // c_out
    while g > 1 and m_rows % g != 0:
        g //= 2
    return g


def _pick_rows(rows, row_bytes, target_bytes=2 << 20):
    """Rows per grid step: whole array if small, else a multiple of 8 dividing
    rows whose x-block stays around `target_bytes` (VMEM-friendly)."""
    cap = min(512, max(8, target_bytes // max(row_bytes, 1)))
    cap = max(8, (cap // 8) * 8)
    if rows <= cap:
        return rows
    tm = cap
    while tm >= 8:
        if rows % tm == 0:
            return tm
        tm -= 8
    return rows  # fallback: odd row count -> single full block


def _im2col_4x4_s2_p1(x_nhwc):
    """(N,H,W,Cin) -> (N*Ho*Wo, 16*Cin) patches for conv k=4, s=2, p=1."""
    n, h, w, c_in = x_nhwc.shape
    ho, wo = h // 2, w // 2
    xpad = jnp.pad(x_nhwc, ((0, 0), (1, 1), (1, 1), (0, 0)))
    taps = []
    for kh in range(4):
        for kw in range(4):
            taps.append(lax.slice(
                xpad, (0, kh, kw, 0),
                (n, kh + 2 * (ho - 1) + 1, kw + 2 * (wo - 1) + 1, c_in),
                (1, 2, 2, 1)))
    patches = jnp.concatenate(taps, axis=-1)     # (N,Ho,Wo,16*Cin), (kh,kw,cin) order
    return patches.reshape(n * ho * wo, 16 * c_in)


def _pack_conv_weight(w_oihw, g):
    """OIHW (Cout,Cin,4,4) -> block-diagonal (g*16*Cin, g*Cout) matching im2col order."""
    c_out, c_in = w_oihw.shape[0], w_oihw.shape[1]
    w_mat = jnp.transpose(w_oihw, (2, 3, 1, 0)).reshape(16 * c_in, c_out)
    if g == 1:
        return w_mat
    return jnp.kron(jnp.eye(g, dtype=w_mat.dtype), w_mat)


# ----------------------------------------------------------------------------
# pallas_call wrappers
# ----------------------------------------------------------------------------
def _conv_layer(x_group, w_bd, bias, rows, lanes):
    kg = x_group.shape[1]
    tm = _pick_rows(rows, kg * 2)
    return pl.pallas_call(
        _mm_bias_lrelu_kernel,
        out_shape=jax.ShapeDtypeStruct((rows, lanes), jnp.bfloat16),
        grid=(rows // tm,),
        in_specs=[
            pl.BlockSpec((tm, kg), lambda i: (i, 0)),
            pl.BlockSpec((kg, lanes), lambda i: (0, 0)),
            pl.BlockSpec((1, lanes), lambda i: (0, 0)),
        ],
        out_specs=pl.BlockSpec((tm, lanes), lambda i: (i, 0)),
        compiler_params=pltpu.CompilerParams(dimension_semantics=("parallel",)),
    )(x_group, w_bd, bias)


def _conv_layer_with_head(x_group, w_bd, bias, wf_bd, bias_f, rows, lanes, g):
    kg = x_group.shape[1]
    tm = _pick_rows(rows, kg * 2)
    return pl.pallas_call(
        _mm_bias_lrelu_head_kernel,
        out_shape=jax.ShapeDtypeStruct((rows, g), jnp.float32),
        grid=(rows // tm,),
        in_specs=[
            pl.BlockSpec((tm, kg), lambda i: (i, 0)),
            pl.BlockSpec((kg, lanes), lambda i: (0, 0)),
            pl.BlockSpec((1, lanes), lambda i: (0, 0)),
            pl.BlockSpec((lanes, g), lambda i: (0, 0)),
            pl.BlockSpec((1, g), lambda i: (0, 0)),
        ],
        out_specs=pl.BlockSpec((tm, g), lambda i: (i, 0)),
        compiler_params=pltpu.CompilerParams(dimension_semantics=("parallel",)),
    )(x_group, w_bd, bias, wf_bd, bias_f)


# ----------------------------------------------------------------------------
# Forward pass (matches Discriminator_local.forward)
# ----------------------------------------------------------------------------
def discriminator_local_forward(x_nchw, convs, final, gan_type='patch'):
    # NCHW -> NHWC; activations travel in bf16 (matmul input precision anyway).
    x = jnp.transpose(x_nchw, (0, 2, 3, 1)).astype(jnp.bfloat16)
    n_layers = len(convs)
    wf_oihw, bf = final
    for li, (w_oihw, b) in enumerate(convs):
        n, h, w, c_in = x.shape
        c_out = w_oihw.shape[0]
        ho, wo = h // 2, w // 2
        m = n * ho * wo
        g = _lane_group(m, c_out)
        lanes = g * c_out
        x_group = _im2col_4x4_s2_p1(x).reshape(m // g, g * 16 * c_in)
        w_bd = _pack_conv_weight(w_oihw, g).astype(jnp.bfloat16)
        bias = jnp.tile(b.reshape(1, c_out).astype(jnp.float32), (1, g))
        if li == n_layers - 1:
            wf_col = wf_oihw.reshape(1, c_out).T                         # (Cout, 1)
            wf_bd = jnp.kron(jnp.eye(g, dtype=wf_col.dtype),
                             wf_col).astype(jnp.bfloat16)                # (lanes, g)
            bias_f = jnp.tile(bf.reshape(1, 1).astype(jnp.float32), (1, g))
            out = _conv_layer_with_head(x_group, w_bd, bias, wf_bd, bias_f,
                                        m // g, lanes, g)
            out = jnp.transpose(out.reshape(n, ho, wo, 1), (0, 3, 1, 2))  # -> NCHW
            if gan_type == 'full':
                # The 1x1 head is affine, so conv(mean(y)) == mean(conv(y)):
                # averaging the patch logits reproduces the 'full' path exactly.
                out = out.mean(axis=(2, 3), keepdims=True)
            return out
        y = _conv_layer(x_group, w_bd, bias, m // g, lanes)
        x = y.reshape(n, ho, wo, c_out)
    raise AssertionError("n_layers must be >= 1")


# ----------------------------------------------------------------------------
# Parameter setup (plain JAX glue, one-time; mirrors torch spectral_norm)
# ----------------------------------------------------------------------------
def spectral_normalize(w_oihw, key, n_iter=1, eps=1e-12):
    """Emulate torch spectral_norm: power iteration on W.view(out, -1)."""
    n_iter = max(n_iter, 1)
    out_c = w_oihw.shape[0]
    w_mat = w_oihw.reshape(out_c, -1)
    u = jax.random.normal(key, (out_c,), jnp.float32)
    u = u / (jnp.linalg.norm(u) + eps)
    v = w_mat.T @ u
    for _ in range(n_iter):
        v = w_mat.T @ u
        v = v / (jnp.linalg.norm(v) + eps)
        u = w_mat @ v
        u = u / (jnp.linalg.norm(u) + eps)
    sigma = u @ (w_mat @ v)
    return w_oihw / sigma


def make_params(key, in_c, ndf_half, n_layers):
    """Replicates Discriminator_local.__init__ channel plan (ndf_half = args.ndf // 2)."""
    channels = [in_c, ndf_half]
    c = ndf_half
    for _ in range(n_layers - 1):
        c = min(c * 2, 512)
        channels.append(c)
    convs = []
    k = key
    for li in range(n_layers):
        cin, cout = channels[li], channels[li + 1]
        k, kw_, kb_, ku_ = jax.random.split(k, 4)
        w = jax.random.normal(kw_, (cout, cin, 4, 4), jnp.float32) * 0.05
        b = jax.random.normal(kb_, (cout,), jnp.float32) * 0.05
        w = spectral_normalize(w, ku_)
        convs.append((w, b))
    k, kw_, kb_, ku_ = jax.random.split(k, 4)
    wf = jax.random.normal(kw_, (1, channels[-1], 1, 1), jnp.float32) * 0.05
    bf = jax.random.normal(kb_, (1,), jnp.float32) * 0.05
    wf = spectral_normalize(wf, ku_)
    return convs, (wf, bf)


# ----------------------------------------------------------------------------
# Pure-JAX fp32 reference (for correctness check)
# ----------------------------------------------------------------------------
def reference_forward(x_nchw, convs, final, gan_type='patch'):
    dn = ('NCHW', 'OIHW', 'NCHW')
    t = x_nchw.astype(jnp.float32)
    for w, b in convs:
        t = lax.conv_general_dilated(t, w, (2, 2), ((1, 1), (1, 1)),
                                     dimension_numbers=dn)
        t = t + b.reshape(1, -1, 1, 1)
        t = jnp.where(t >= 0.0, t, 0.2 * t)
    if gan_type == 'full':
        t = jnp.mean(t, axis=(2, 3), keepdims=True)
    wf, bf = final
    t = lax.conv_general_dilated(t, wf, (1, 1), ((0, 0), (0, 0)),
                                 dimension_numbers=dn)
    return t + bf.reshape(1, -1, 1, 1)


# ----------------------------------------------------------------------------
if __name__ == "__main__":
    # args-equivalent: nchannels=4, ndf=32 (-> self.ndf=16), n_disc_layers=3,
    # n_groupnorm=4 (GroupNorm unused in forward), gan_type='patch' (default)
    in_c, ndf, n_disc_layers = 4, 32, 3
    key = jax.random.PRNGKey(0)
    kx, kp = jax.random.split(key)

    x = jax.random.normal(kx, (2, in_c, 16, 16), jnp.float32)  # NCHW input
    convs, final = make_params(kp, in_c, ndf // 2, n_disc_layers)

    fwd = jax.jit(lambda inp: discriminator_local_forward(inp, convs, final,
                                                          gan_type='patch'))
    out = jax.block_until_ready(fwd(x))

    ref = jax.block_until_ready(reference_forward(x, convs, final, gan_type='patch'))

    assert out.shape == ref.shape == (2, 1, 2, 2), (out.shape, ref.shape)
    # Matmul inputs / inter-layer activations are bf16 (f32 accumulation)
    # -> compare at bf16-level tolerance.
    np.testing.assert_allclose(np.asarray(out), np.asarray(ref), rtol=3e-2, atol=3e-2)

    print("KERNEL_OK")
</pallas_src>

<mosaic_0001>
module attributes {stable_mosaic.version = 11 : i64} {
  func.func @_mm_bias_lrelu_kernel(%arg0: i32, %arg1: memref<16x512xbf16, #tpu.memory_space<vmem>>, %arg2: memref<512x128xbf16, #tpu.memory_space<vmem>>, %arg3: memref<1x128xf32, #tpu.memory_space<vmem>>, %arg4: memref<16x128xbf16, #tpu.memory_space<vmem>>) attributes {dimension_semantics = [#tpu.dimension_semantics<parallel>], iteration_bounds = array<i64: 1>, scalar_prefetch = 0 : i64, scratch_operands = 0 : i64, tpu.core_type = #tpu.core_type<tc>, window_params = [{transform_indices = @transform_0, window_bounds = array<i64: 16, 512>}, {pipeline_mode = #tpu.pipeline_mode<synchronous>, transform_indices = @transform_1, window_bounds = array<i64: 512, 128>}, {pipeline_mode = #tpu.pipeline_mode<synchronous>, transform_indices = @transform_2, window_bounds = array<i64: 1, 128>}, {transform_indices = @transform_3, window_bounds = array<i64: 16, 128>}]} {
    %c0 = arith.constant 0 : index
    %c0_0 = arith.constant 0 : index
    %0 = vector.load %arg1[%c0, %c0_0] : memref<16x512xbf16, #tpu.memory_space<vmem>>, vector<16x512xbf16>
    %c0_1 = arith.constant 0 : index
    %c0_2 = arith.constant 0 : index
    %1 = vector.load %arg2[%c0_1, %c0_2] : memref<512x128xbf16, #tpu.memory_space<vmem>>, vector<512x128xbf16>
    %cst = arith.constant dense<0.000000e+00> : vector<16x128xf32>
    %2 = tpu.matmul %0, %1, %cst {dimension_numbers = #tpu.dot_dimension_numbers<[1], [0], [0], [1], [0, 0, 1, 1], [], []>} : vector<16x512xbf16>, vector<512x128xbf16>, vector<16x128xf32> -> vector<16x128xf32>
    %c0_3 = arith.constant 0 : index
    %c0_4 = arith.constant 0 : index
    %3 = vector.load %arg3[%c0_3, %c0_4] : memref<1x128xf32, #tpu.memory_space<vmem>>, vector<1x128xf32>
    %4 = vector.broadcast %3 : vector<1x128xf32> to vector<16x128xf32>
    %5 = arith.addf %2, %4 : vector<16x128xf32>
    %cst_5 = arith.constant 0.000000e+00 : f32
    %6 = vector.broadcast %cst_5 : f32 to vector<16x128xf32>
    %7 = arith.cmpf oge, %5, %6 : vector<16x128xf32>
    %cst_6 = arith.constant 2.000000e-01 : f32
    %8 = vector.broadcast %cst_6 : f32 to vector<16x128xf32>
    %9 = arith.mulf %8, %5 : vector<16x128xf32>
    %10 = arith.select %7, %5, %9 : vector<16x128xi1>, vector<16x128xf32>
    %11 = arith.truncf %10 : vector<16x128xf32> to vector<16x128xbf16>
    %c0_7 = arith.constant 0 : index
    %c0_8 = arith.constant 0 : index
    %12 = vector.load %arg4[%c0_7, %c0_8] : memref<16x128xbf16, #tpu.memory_space<vmem>>, vector<16x128xbf16>
    tpu.vector_store %arg4[%c0_7, %c0_8], %11 {strides = array<i32>} : memref<16x128xbf16, #tpu.memory_space<vmem>>, vector<16x128xbf16>,
    return
  }
  func.func @transform_0(%arg0: i32) -> (i32, i32) {
    %c0_i32 = arith.constant 0 : i32
    %c0_i32_0 = arith.constant 0 : i32
    return %arg0, %c0_i32 : i32, i32
  }
  func.func @transform_1(%arg0: i32) -> (i32, i32) {
    %c0_i32 = arith.constant 0 : i32
    %c0_i32_0 = arith.constant 0 : i32
    %c0_i32_1 = arith.constant 0 : i32
    return %c0_i32, %c0_i32_0 : i32, i32
  }
  func.func @transform_2(%arg0: i32) -> (i32, i32) {
    %c0_i32 = arith.constant 0 : i32
    %c0_i32_0 = arith.constant 0 : i32
    %c0_i32_1 = arith.constant 0 : i32
    return %c0_i32, %c0_i32_0 : i32, i32
  }
  func.func @transform_3(%arg0: i32) -> (i32, i32) {
    %c0_i32 = arith.constant 0 : i32
    %c0_i32_0 = arith.constant 0 : i32
    return %arg0, %c0_i32 : i32, i32
  }
}

module attributes {stable_mosaic.version = 11 : i64} {
  func.func @_mm_bias_lrelu_kernel(%arg0: i32, %arg1: memref<8x1024xbf16, #tpu.memory_space<vmem>>, %arg2: memref<1024x128xbf16, #tpu.memory_space<vmem>>, %arg3: memref<1x128xf32, #tpu.memory_space<vmem>>, %arg4: memref<8x128xbf16, #tpu.memory_space<vmem>>) attributes {dimension_semantics = [#tpu.dimension_semantics<parallel>], iteration_bounds = array<i64: 1>, scalar_prefetch = 0 : i64, scratch_operands = 0 : i64, tpu.core_type = #tpu.core_type<tc>, window_params = [{transform_indices = @transform_0, window_bounds = array<i64: 8, 1024>}, {pipeline_mode = #tpu.pipeline_mode<synchronous>, transform_indices = @transform_1, window_bounds = array<i64: 1024, 128>}, {pipeline_mode = #tpu.pipeline_mode<synchronous>, transform_indices = @transform_2, window_bounds = array<i64: 1, 128>}, {transform_indices = @transform_3, window_bounds = array<i64: 8, 128>}]} {
    %c0 = arith.constant 0 : index
    %c0_0 = arith.constant 0 : index
    %0 = vector.load %arg1[%c0, %c0_0] : memref<8x1024xbf16, #tpu.memory_space<vmem>>, vector<8x1024xbf16>
    %c0_1 = arith.constant 0 : index
    %c0_2 = arith.constant 0 : index
    %1 = vector.load %arg2[%c0_1, %c0_2] : memref<1024x128xbf16, #tpu.memory_space<vmem>>, vector<1024x128xbf16>
    %cst = arith.constant dense<0.000000e+00> : vector<8x128xf32>
    %2 = tpu.matmul %0, %1, %cst {dimension_numbers = #tpu.dot_dimension_numbers<[1], [0], [0], [1], [0, 0, 1, 1], [], []>} : vector<8x1024xbf16>, vector<1024x128xbf16>, vector<8x128xf32> -> vector<8x128xf32>
    %c0_3 = arith.constant 0 : index
    %c0_4 = arith.constant 0 : index
    %3 = vector.load %arg3[%c0_3, %c0_4] : memref<1x128xf32, #tpu.memory_space<vmem>>, vector<1x128xf32>
    %4 = vector.broadcast %3 : vector<1x128xf32> to vector<8x128xf32>
    %5 = arith.addf %2, %4 : vector<8x128xf32>
    %cst_5 = arith.constant 0.000000e+00 : f32
    %6 = vector.broadcast %cst_5 : f32 to vector<8x128xf32>
    %7 = arith.cmpf oge, %5, %6 : vector<8x128xf32>
    %cst_6 = arith.constant 2.000000e-01 : f32
    %8 = vector.broadcast %cst_6 : f32 to vector<8x128xf32>
    %9 = arith.mulf %8, %5 : vector<8x128xf32>
    %10 = arith.select %7, %5, %9 : vector<8x128xi1>, vector<8x128xf32>
    %11 = arith.truncf %10 : vector<8x128xf32> to vector<8x128xbf16>
    %c0_7 = arith.constant 0 : index
    %c0_8 = arith.constant 0 : index
    %12 = vector.load %arg4[%c0_7, %c0_8] : memref<8x128xbf16, #tpu.memory_space<vmem>>, vector<8x128xbf16>
    tpu.vector_store %arg4[%c0_7, %c0_8], %11 {strides = array<i32>} : memref<8x128xbf16, #tpu.memory_space<vmem>>, vector<8x128xbf16>,
    return
  }
  func.func @transform_0(%arg0: i32) -> (i32, i32) {
    %c0_i32 = arith.constant 0 : i32
    %c0_i32_0 = arith.constant 0 : i32
    return %arg0, %c0_i32 : i32, i32
  }
  func.func @transform_1(%arg0: i32) -> (i32, i32) {
    %c0_i32 = arith.constant 0 : i32
    %c0_i32_0 = arith.constant 0 : i32
    %c0_i32_1 = arith.constant 0 : i32
    return %c0_i32, %c0_i32_0 : i32, i32
  }
  func.func @transform_2(%arg0: i32) -> (i32, i32) {
    %c0_i32 = arith.constant 0 : i32
    %c0_i32_0 = arith.constant 0 : i32
    %c0_i32_1 = arith.constant 0 : i32
    return %c0_i32, %c0_i32_0 : i32, i32
  }
  func.func @transform_3(%arg0: i32) -> (i32, i32) {
    %c0_i32 = arith.constant 0 : i32
    %c0_i32_0 = arith.constant 0 : i32
    return %arg0, %c0_i32 : i32, i32
  }
}

module attributes {stable_mosaic.version = 11 : i64} {
  func.func @_mm_bias_lrelu_head_kernel(%arg0: i32, %arg1: memref<4x1024xbf16, #tpu.memory_space<vmem>>, %arg2: memref<1024x128xbf16, #tpu.memory_space<vmem>>, %arg3: memref<1x128xf32, #tpu.memory_space<vmem>>, %arg4: memref<128x2xbf16, #tpu.memory_space<vmem>>, %arg5: memref<1x2xf32, #tpu.memory_space<vmem>>, %arg6: memref<4x2xf32, #tpu.memory_space<vmem>>) attributes {dimension_semantics = [#tpu.dimension_semantics<parallel>], iteration_bounds = array<i64: 1>, scalar_prefetch = 0 : i64, scratch_operands = 0 : i64, tpu.core_type = #tpu.core_type<tc>, window_params = [{transform_indices = @transform_0, window_bounds = array<i64: 4, 1024>}, {pipeline_mode = #tpu.pipeline_mode<synchronous>, transform_indices = @transform_1, window_bounds = array<i64: 1024, 128>}, {pipeline_mode = #tpu.pipeline_mode<synchronous>, transform_indices = @transform_2, window_bounds = array<i64: 1, 128>}, {pipeline_mode = #tpu.pipeline_mode<synchronous>, transform_indices = @transform_3, window_bounds = array<i64: 128, 2>}, {pipeline_mode = #tpu.pipeline_mode<synchronous>, transform_indices = @transform_4, window_bounds = array<i64: 1, 2>}, {transform_indices = @transform_5, window_bounds = array<i64: 4, 2>}]} {
    %c0 = arith.constant 0 : index
    %c0_0 = arith.constant 0 : index
    %0 = vector.load %arg1[%c0, %c0_0] : memref<4x1024xbf16, #tpu.memory_space<vmem>>, vector<4x1024xbf16>
    %c0_1 = arith.constant 0 : index
    %c0_2 = arith.constant 0 : index
    %1 = vector.load %arg2[%c0_1, %c0_2] : memref<1024x128xbf16, #tpu.memory_space<vmem>>, vector<1024x128xbf16>
    %cst = arith.constant dense<0.000000e+00> : vector<4x128xf32>
    %2 = tpu.matmul %0, %1, %cst {dimension_numbers = #tpu.dot_dimension_numbers<[1], [0], [0], [1], [0, 0, 1, 1], [], []>} : vector<4x1024xbf16>, vector<1024x128xbf16>, vector<4x128xf32> -> vector<4x128xf32>
    %c0_3 = arith.constant 0 : index
    %c0_4 = arith.constant 0 : index
    %3 = vector.load %arg3[%c0_3, %c0_4] : memref<1x128xf32, #tpu.memory_space<vmem>>, vector<1x128xf32>
    %4 = vector.broadcast %3 : vector<1x128xf32> to vector<4x128xf32>
    %5 = arith.addf %2, %4 : vector<4x128xf32>
    %cst_5 = arith.constant 0.000000e+00 : f32
    %6 = vector.broadcast %cst_5 : f32 to vector<4x128xf32>
    %7 = arith.cmpf oge, %5, %6 : vector<4x128xf32>
    %cst_6 = arith.constant 2.000000e-01 : f32
    %8 = vector.broadcast %cst_6 : f32 to vector<4x128xf32>
    %9 = arith.mulf %8, %5 : vector<4x128xf32>
    %10 = arith.select %7, %5, %9 : vector<4x128xi1>, vector<4x128xf32>
    %11 = arith.truncf %10 : vector<4x128xf32> to vector<4x128xbf16>
    %c0_7 = arith.constant 0 : index
    %c0_8 = arith.constant 0 : index
    %12 = vector.load %arg4[%c0_7, %c0_8] : memref<128x2xbf16, #tpu.memory_space<vmem>>, vector<128x2xbf16>
    %cst_9 = arith.constant dense<0.000000e+00> : vector<4x2xf32>
    %13 = tpu.matmul %11, %12, %cst_9 {dimension_numbers = #tpu.dot_dimension_numbers<[1], [0], [0], [1], [0, 0, 1, 1], [], []>} : vector<4x128xbf16>, vector<128x2xbf16>, vector<4x2xf32> -> vector<4x2xf32>
    %c0_10 = arith.constant 0 : index
    %c0_11 = arith.constant 0 : index
    %14 = vector.load %arg5[%c0_10, %c0_11] : memref<1x2xf32, #tpu.memory_space<vmem>>, vector<1x2xf32>
    %15 = vector.broadcast %14 : vector<1x2xf32> to vector<4x2xf32>
    %16 = arith.addf %13, %15 : vector<4x2xf32>
    %c0_12 = arith.constant 0 : index
    %c0_13 = arith.constant 0 : index
    %17 = vector.load %arg6[%c0_12, %c0_13] : memref<4x2xf32, #tpu.memory_space<vmem>>, vector<4x2xf32>
    tpu.vector_store %arg6[%c0_12, %c0_13], %16 {strides = array<i32>} : memref<4x2xf32, #tpu.memory_space<vmem>>, vector<4x2xf32>,
    return
  }
  func.func @transform_0(%arg0: i32) -> (i32, i32) {
    %c0_i32 = arith.constant 0 : i32
    %c0_i32_0 = arith.constant 0 : i32
    return %arg0, %c0_i32 : i32, i32
  }
  func.func @transform_1(%arg0: i32) -> (i32, i32) {
    %c0_i32 = arith.constant 0 : i32
    %c0_i32_0 = arith.constant 0 : i32
    %c0_i32_1 = arith.constant 0 : i32
    return %c0_i32, %c0_i32_0 : i32, i32
  }
  func.func @transform_2(%arg0: i32) -> (i32, i32) {
    %c0_i32 = arith.constant 0 : i32
    %c0_i32_0 = arith.constant 0 : i32
    %c0_i32_1 = arith.constant 0 : i32
    return %c0_i32, %c0_i32_0 : i32, i32
  }
  func.func @transform_3(%arg0: i32) -> (i32, i32) {
    %c0_i32 = arith.constant 0 : i32
    %c0_i32_0 = arith.constant 0 : i32
    %c0_i32_1 = arith.constant 0 : i32
    return %c0_i32, %c0_i32_0 : i32, i32
  }
  func.func @transform_4(%arg0: i32) -> (i32, i32) {
    %c0_i32 = arith.constant 0 : i32
    %c0_i32_0 = arith.constant 0 : i32
    %c0_i32_1 = arith.constant 0 : i32
    return %c0_i32, %c0_i32_0 : i32, i32
  }
  func.func @transform_5(%arg0: i32) -> (i32, i32) {
    %c0_i32 = arith.constant 0 : i32
    %c0_i32_0 = arith.constant 0 : i32
    return %arg0, %c0_i32 : i32, i32
  }
}

</mosaic_0001>

<llo_original>
// kernel: _lambda_.4
$region0: #{_lambda_.4}
  #allocation0 [shape = 'u32[]', space=smem, size = 0x4, offset = 0x4, fixed_abs, tag = 'smem constant byte address 0x4 - core index']
  #allocation1 [shape = 'u32[144,128]{1,0:T(1,128)}', space=vmem, size = 0x12000, scoped, tag = 'internal scratch']
  %s0 = inlined_call_operand.vmem [shape: bf16[8,1024], index: 0, kind: input, shape index: {}]
  %s1 = inlined_call_operand.vmem [shape: bf16[1024,128], index: 1, kind: input, shape index: {}]
  %s2 = inlined_call_operand.vmem [shape: f32[1,128], index: 2, kind: input, shape index: {}]
  %s3 = inlined_call_operand.vmem [shape: bf16[8,128], index: 3, kind: output, shape index: {}]
  %s4 = sld [smem:[#allocation0]]
  $region22: #{_lambda_.4} parent=0
    _
  %s6 = ssub.s32 1, %s4
  %s7 = scalar_select 0, %s6, %s4
  // Predicated region
  $region2: #{_lambda_.4} parent=0 // pred_check
    _
  $region3: #{_lambda_.4} parent=0 // pred_check_branch
    %9 = sbr.rel (0) target = $region5
  $region4: #{_lambda_.4} parent=0 // pred_region
    _
  $region5: #{_lambda_.4} parent=0 // pred_fallthru
    _
  // Predicated region
  $region6: #{_lambda_.4} parent=0 // pred_check
    _
  $region7: #{_lambda_.4} parent=0 // pred_check_branch
    %11 = sbr.rel (0) target = $region9
  $region8: #{_lambda_.4} parent=0 // pred_region
    _
  $region9: #{_lambda_.4} parent=0 // pred_fallthru
    _
  // Predicated region
  $region10: #{_lambda_.4} parent=0 // pred_check
    _
  $region11: #{_lambda_.4} parent=0 // pred_check_branch
    %13 = sbr.rel (0) target = $region13
  $region12: #{_lambda_.4} parent=0 // pred_region
    _
  $region13: #{_lambda_.4} parent=0 // pred_fallthru
    _
  %v15 = vld [vmem:[%s0] sm:$0xff]
  %v16 = vld [vmem:[%s0 + $0x8] sm:$0xff]
  %v17 = vld [vmem:[%s0 + $0x10] sm:$0xff]
  %v18 = vld [vmem:[%s0 + $0x18] sm:$0xff]
  %v19 = vld [vmem:[%s1] sm:$0xf]
  %v20 = vld [vmem:[%s1 + $0x4] sm:$0xf]
  %v21 = vld [vmem:[%s1 + $0x8] sm:$0xf]
  %v22 = vld [vmem:[%s1 + $0xc] sm:$0xf]
  %v23 = vld [vmem:[%s1 + $0x10] sm:$0xf]
  %v24 = vld [vmem:[%s1 + $0x14] sm:$0xf]
  %v25 = vld [vmem:[%s1 + $0x18] sm:$0xf]
  %v26 = vld [vmem:[%s1 + $0x1c] sm:$0xf]
  %v27 = vld [vmem:[%s1 + $0x20] sm:$0xf]
  %v28 = vld [vmem:[%s1 + $0x24] sm:$0xf]
  %v29 = vld [vmem:[%s1 + $0x28] sm:$0xf]
  %v30 = vld [vmem:[%s1 + $0x2c] sm:$0xf]
  %v31 = vld [vmem:[%s1 + $0x30] sm:$0xf]
  %v32 = vld [vmem:[%s1 + $0x34] sm:$0xf]
  %v33 = vld [vmem:[%s1 + $0x38] sm:$0xf]
  %v34 = vld [vmem:[%s1 + $0x3c] sm:$0xf]
  %v35 = vld [vmem:[%s1 + $0x40] sm:$0xf]
  %v36 = vld [vmem:[%s1 + $0x44] sm:$0xf]
  %v37 = vld [vmem:[%s1 + $0x48] sm:$0xf]
  %v38 = vld [vmem:[%s1 + $0x4c] sm:$0xf]
  %v39 = vld [vmem:[%s1 + $0x50] sm:$0xf]
  %v40 = vld [vmem:[%s1 + $0x54] sm:$0xf]
  %v41 = vld [vmem:[%s1 + $0x58] sm:$0xf]
  %v42 = vld [vmem:[%s1 + $0x5c] sm:$0xf]
  %v43 = vld [vmem:[%s1 + $0x60] sm:$0xf]
  %v44 = vld [vmem:[%s1 + $0x64] sm:$0xf]
  %v45 = vld [vmem:[%s1 + $0x68] sm:$0xf]
  %v46 = vld [vmem:[%s1 + $0x6c] sm:$0xf]
  %v47 = vld [vmem:[%s1 + $0x70] sm:$0xf]
  %v48 = vld [vmem:[%s1 + $0x74] sm:$0xf]
  %v49 = vld [vmem:[%s1 + $0x78] sm:$0xf]
  %v50 = vld [vmem:[%s1 + $0x7c] sm:$0xf]
  %v51 = vld [vmem:[%s1 + $0x80] sm:$0xf]
  %v52 = vld [vmem:[%s1 + $0x84] sm:$0xf]
  %v53 = vld [vmem:[%s1 + $0x88] sm:$0xf]
  %v54 = vld [vmem:[%s1 + $0x8c] sm:$0xf]
  %v55 = vld [vmem:[%s1 + $0x90] sm:$0xf]
  %v56 = vld [vmem:[%s1 + $0x94] sm:$0xf]
  %v57 = vld [vmem:[%s1 + $0x98] sm:$0xf]
  %v58 = vld [vmem:[%s1 + $0x9c] sm:$0xf]
  %v59 = vld [vmem:[%s1 + $0xa0] sm:$0xf]
  %v60 = vld [vmem:[%s1 + $0xa4] sm:$0xf]
  %v61 = vld [vmem:[%s1 + $0xa8] sm:$0xf]
  %v62 = vld [vmem:[%s1 + $0xac] sm:$0xf]
  %v63 = vld [vmem:[%s1 + $0xb0] sm:$0xf]
  %v64 = vld [vmem:[%s1 + $0xb4] sm:$0xf]
  %v65 = vld [vmem:[%s1 + $0xb8] sm:$0xf]
  %v66 = vld [vmem:[%s1 + $0xbc] sm:$0xf]
  %v67 = vld [vmem:[%s1 + $0xc0] sm:$0xf]
  %v68 = vld [vmem:[%s1 + $0xc4] sm:$0xf]
  %v69 = vld [vmem:[%s1 + $0xc8] sm:$0xf]
  %v70 = vld [vmem:[%s1 + $0xcc] sm:$0xf]
  %v71 = vld [vmem:[%s1 + $0xd0] sm:$0xf]
  %v72 = vld [vmem:[%s1 + $0xd4] sm:$0xf]
  %v73 = vld [vmem:[%s1 + $0xd8] sm:$0xf]
  %v74 = vld [vmem:[%s1 + $0xdc] sm:$0xf]
  %v75 = vld [vmem:[%s1 + $0xe0] sm:$0xf]
  %v76 = vld [vmem:[%s1 + $0xe4] sm:$0xf]
  %v77 = vld [vmem:[%s1 + $0xe8] sm:$0xf]
  %v78 = vld [vmem:[%s1 + $0xec] sm:$0xf]
  %v79 = vld [vmem:[%s1 + $0xf0] sm:$0xf]
  %v80 = vld [vmem:[%s1 + $0xf4] sm:$0xf]
  %v81 = vld [vmem:[%s1 + $0xf8] sm:$0xf]
  %v82 = vld [vmem:[%s1 + $0xfc] sm:$0xf]
  %v83 = vld [vmem:[%s1 + $0x100] sm:$0xf]
  %v84 = vld [vmem:[%s1 + $0x104] sm:$0xf]
  %v85 = vld [vmem:[%s1 + $0x108] sm:$0xf]
  %v86 = vld [vmem:[%s1 + $0x10c] sm:$0xf]
  %v87 = vld [vmem:[%s1 + $0x110] sm:$0xf]
  %v88 = vld [vmem:[%s1 + $0x114] sm:$0xf]
  %v89 = vld [vmem:[%s1 + $0x118] sm:$0xf]
  %v90 = vld [vmem:[%s1 + $0x11c] sm:$0xf]
  %v91 = vld [vmem:[%s1 + $0x120] sm:$0xf]
  %v92 = vld [vmem:[%s1 + $0x124] sm:$0xf]
  %v93 = vld [vmem:[%s1 + $0x128] sm:$0xf]
  %v94 = vld [vmem:[%s1 + $0x12c] sm:$0xf]
  %v95 = vld [vmem:[%s1 + $0x130] sm:$0xf]
  %v96 = vld [vmem:[%s1 + $0x134] sm:$0xf]
  %v97 = vld [vmem:[%s1 + $0x138] sm:$0xf]
  %v98 = vld [vmem:[%s1 + $0x13c] sm:$0xf]
  %v99 = vld [vmem:[%s1 + $0x140] sm:$0xf]
  %v100 = vld [vmem:[%s1 + $0x144] sm:$0xf]
  %v101 = vld [vmem:[%s1 + $0x148] sm:$0xf]
  %v102 = vld [vmem:[%s1 + $0x14c] sm:$0xf]
  %v103 = vld [vmem:[%s1 + $0x150] sm:$0xf]
  %v104 = vld [vmem:[%s1 + $0x154] sm:$0xf]
  %v105 = vld [vmem:[%s1 + $0x158] sm:$0xf]
  %v106 = vld [vmem:[%s1 + $0x15c] sm:$0xf]
  %v107 = vld [vmem:[%s1 + $0x160] sm:$0xf]
  %v108 = vld [vmem:[%s1 + $0x164] sm:$0xf]
  %v109 = vld [vmem:[%s1 + $0x168] sm:$0xf]
  %v110 = vld [vmem:[%s1 + $0x16c] sm:$0xf]
  %v111 = vld [vmem:[%s1 + $0x170] sm:$0xf]
  %v112 = vld [vmem:[%s1 + $0x174] sm:$0xf]
  %v113 = vld [vmem:[%s1 + $0x178] sm:$0xf]
  %v114 = vld [vmem:[%s1 + $0x17c] sm:$0xf]
  %v115 = vld [vmem:[%s1 + $0x180] sm:$0xf]
  %v116 = vld [vmem:[%s1 + $0x184] sm:$0xf]
  %v117 = vld [vmem:[%s1 + $0x188] sm:$0xf]
  %v118 = vld [vmem:[%s1 + $0x18c] sm:$0xf]
  %v119 = vld [vmem:[%s1 + $0x190] sm:$0xf]
  %v120 = vld [vmem:[%s1 + $0x194] sm:$0xf]
  %v121 = vld [vmem:[%s1 + $0x198] sm:$0xf]
  %v122 = vld [vmem:[%s1 + $0x19c] sm:$0xf]
  %v123 = vld [vmem:[%s1 + $0x1a0] sm:$0xf]
  %v124 = vld [vmem:[%s1 + $0x1a4] sm:$0xf]
  %v125 = vld [vmem:[%s1 + $0x1a8] sm:$0xf]
  %v126 = vld [vmem:[%s1 + $0x1ac] sm:$0xf]
  %v127 = vld [vmem:[%s1 + $0x1b0] sm:$0xf]
  %v128 = vld [vmem:[%s1 + $0x1b4] sm:$0xf]
  %v129 = vld [vmem:[%s1 + $0x1b8] sm:$0xf]
  %v130 = vld [vmem:[%s1 + $0x1bc] sm:$0xf]
  %v131 = vld [vmem:[%s1 + $0x1c0] sm:$0xf]
  %v132 = vld [vmem:[%s1 + $0x1c4] sm:$0xf]
  %v133 = vld [vmem:[%s1 + $0x1c8] sm:$0xf]
  %v134 = vld [vmem:[%s1 + $0x1cc] sm:$0xf]
  %v135 = vld [vmem:[%s1 + $0x1d0] sm:$0xf]
  %v136 = vld [vmem:[%s1 + $0x1d4] sm:$0xf]
  %v137 = vld [vmem:[%s1 + $0x1d8] sm:$0xf]
  %v138 = vld [vmem:[%s1 + $0x1dc] sm:$0xf]
  %v139 = vld [vmem:[%s1 + $0x1e0] sm:$0xf]
  %v140 = vld [vmem:[%s1 + $0x1e4] sm:$0xf]
  %v141 = vld [vmem:[%s1 + $0x1e8] sm:$0xf]
  %v142 = vld [vmem:[%s1 + $0x1ec] sm:$0xf]
  %v143 = vld [vmem:[%s1 + $0x1f0] sm:$0xf]
  %v144 = vld [vmem:[%s1 + $0x1f4] sm:$0xf]
  %v145 = vld [vmem:[%s1 + $0x1f8] sm:$0xf]
  %v146 = vld [vmem:[%s1 + $0x1fc] sm:$0xf]
  %v147 = vld [vmem:[%s2] sm:$0x1]
  %v149 = vlaneseq
  %v150 = vshrl.u32 %v149, 7
  %v151 = vsub.s32 0, %v150
  %v152 = vrot.slane %v147, %v151
  %v158 = vunpack.c.l.b16 %v15
  %v159 = vunpack.c.h.b16 %v15
  %v160 = vunpack.c.l.b16 %v16
  %v161 = vunpack.c.h.b16 %v16
  %v162 = vunpack.c.l.b16 %v17
  %v163 = vunpack.c.h.b16 %v17
  %v164 = vunpack.c.l.b16 %v18
  %v165 = vunpack.c.h.b16 %v18
  %v166 = vpack.c.b16 %v158, %v158
  %v167 = vpack.c.b16 %v159, %v159
  %v168 = vpack.c.b16 %v160, %v160
  %v169 = vpack.c.b16 %v161, %v161
  %v170 = vpack.c.b16 %v162, %v162
  %v171 = vpack.c.b16 %v163, %v163
  %v172 = vpack.c.b16 %v164, %v164
  %v173 = vpack.c.b16 %v165, %v165
  %v310 = vunpack.c.l.b16 %v19
  %v311 = vunpack.c.l.b16 %v20
  %v312 = vunpack.c.l.b16 %v21
  %v313 = vunpack.c.l.b16 %v22
  %v314 = vunpack.c.l.b16 %v23
  %v315 = vunpack.c.l.b16 %v24
  %v316 = vunpack.c.l.b16 %v25
  %v317 = vunpack.c.l.b16 %v26
  %v318 = vunpack.c.l.b16 %v27
  %v319 = vunpack.c.l.b16 %v28
  %v320 = vunpack.c.l.b16 %v29
  %v321 = vunpack.c.l.b16 %v30
  %v322 = vunpack.c.l.b16 %v31
  %v323 = vunpack.c.l.b16 %v32
  %v324 = vunpack.c.l.b16 %v33
  %v325 = vunpack.c.l.b16 %v34
  %v326 = vunpack.c.l.b16 %v35
  %v327 = vunpack.c.l.b16 %v36
  %v328 = vunpack.c.l.b16 %v37
  %v329 = vunpack.c.l.b16 %v38
  %v330 = vunpack.c.l.b16 %v39
  %v331 = vunpack.c.l.b16 %v40
  %v332 = vunpack.c.l.b16 %v41
  %v333 = vunpack.c.l.b16 %v42
  %v334 = vunpack.c.l.b16 %v43
  %v335 = vunpack.c.l.b16 %v44
  %v336 = vunpack.c.l.b16 %v45
  %v337 = vunpack.c.l.b16 %v46
  %v338 = vunpack.c.l.b16 %v47
  %v339 = vunpack.c.l.b16 %v48
  %v340 = vunpack.c.l.b16 %v49
  %v341 = vunpack.c.l.b16 %v50
  %v342 = vunpack.c.l.b16 %v51
  %v343 = vunpack.c.l.b16 %v52
  %v344 = vunpack.c.l.b16 %v53
  %v345 = vunpack.c.l.b16 %v54
  %v346 = vunpack.c.l.b16 %v55
  %v347 = vunpack.c.l.b16 %v56
  %v348 = vunpack.c.l.b16 %v57
  %v349 = vunpack.c.l.b16 %v58
  %v350 = vunpack.c.l.b16 %v59
  %v351 = vunpack.c.l.b16 %v60
  %v352 = vunpack.c.l.b16 %v61
  %v353 = vunpack.c.l.b16 %v62
  %v354 = vunpack.c.l.b16 %v63
  %v355 = vunpack.c.l.b16 %v64
  %v356 = vunpack.c.l.b16 %v65
  %v357 = vunpack.c.l.b16 %v66
  %v358 = vunpack.c.l.b16 %v67
  %v359 = vunpack.c.l.b16 %v68
  %v360 = vunpack.c.l.b16 %v69
  %v361 = vunpack.c.l.b16 %v70
  %v362 = vunpack.c.l.b16 %v71
  %v363 = vunpack.c.l.b16 %v72
  %v364 = vunpack.c.l.b16 %v73
  %v365 = vunpack.c.l.b16 %v74
  %v366 = vunpack.c.l.b16 %v75
  %v367 = vunpack.c.l.b16 %v76
  %v368 = vunpack.c.l.b16 %v77
  %v369 = vunpack.c.l.b16 %v78
  %v370 = vunpack.c.l.b16 %v79
  %v371 = vunpack.c.l.b16 %v80
  %v372 = vunpack.c.l.b16 %v81
  %v373 = vunpack.c.l.b16 %v82
  %v374 = vunpack.c.l.b16 %v83
  %v375 = vunpack.c.l.b16 %v84
  %v376 = vunpack.c.l.b16 %v85
  %v377 = vunpack.c.l.b16 %v86
  %v378 = vunpack.c.l.b16 %v87
  %v379 = vunpack.c.l.b16 %v88
  %v380 = vunpack.c.l.b16 %v89
  %v381 = vunpack.c.l.b16 %v90
  %v382 = vunpack.c.l.b16 %v91
  %v383 = vunpack.c.l.b16 %v92
  %v384 = vunpack.c.l.b16 %v93
  %v385 = vunpack.c.l.b16 %v94
  %v386 = vunpack.c.l.b16 %v95
  %v387 = vunpack.c.l.b16 %v96
  %v388 = vunpack.c.l.b16 %v97
  %v389 = vunpack.c.l.b16 %v98
  %v390 = vunpack.c.l.b16 %v99
  %v391 = vunpack.c.l.b16 %v100
  %v392 = vunpack.c.l.b16 %v101
  %v393 = vunpack.c.l.b16 %v102
  %v394 = vunpack.c.l.b16 %v103
  %v395 = vunpack.c.l.b16 %v104
  %v396 = vunpack.c.l.b16 %v105
  %v397 = vunpack.c.l.b16 %v106
  %v398 = vunpack.c.l.b16 %v107
  %v399 = vunpack.c.l.b16 %v108
  %v400 = vunpack.c.l.b16 %v109
  %v401 = vunpack.c.l.b16 %v110
  %v402 = vunpack.c.l.b16 %v111
  %v403 = vunpack.c.l.b16 %v112
  %v404 = vunpack.c.l.b16 %v113
  %v405 = vunpack.c.l.b16 %v114
  %v406 = vunpack.c.l.b16 %v115
  %v407 = vunpack.c.l.b16 %v116
  %v408 = vunpack.c.l.b16 %v117
  %v409 = vunpack.c.l.b16 %v118
  %v410 = vunpack.c.l.b16 %v119
  %v411 = vunpack.c.l.b16 %v120
  %v412 = vunpack.c.l.b16 %v121
  %v413 = vunpack.c.l.b16 %v122
  %v414 = vunpack.c.l.b16 %v123
  %v415 = vunpack.c.l.b16 %v124
  %v416 = vunpack.c.l.b16 %v125
  %v417 = vunpack.c.l.b16 %v126
  %v418 = vunpack.c.l.b16 %v127
  %v419 = vunpack.c.l.b16 %v128
  %v420 = vunpack.c.l.b16 %v129
  %v421 = vunpack.c.l.b16 %v130
  %v422 = vunpack.c.l.b16 %v131
  %v423 = vunpack.c.l.b16 %v132
  %v424 = vunpack.c.l.b16 %v133
  %v425 = vunpack.c.l.b16 %v134
  %v426 = vunpack.c.l.b16 %v135
  %v427 = vunpack.c.l.b16 %v136
  %v428 = vunpack.c.l.b16 %v137
  %v429 = vunpack.c.l.b16 %v138
  %v430 = vunpack.c.l.b16 %v139
  %v431 = vunpack.c.l.b16 %v140
  %v432 = vunpack.c.l.b16 %v141
  %v433 = vunpack.c.l.b16 %v142
  %v434 = vunpack.c.l.b16 %v143
  %v435 = vunpack.c.l.b16 %v144
  %v436 = vunpack.c.l.b16 %v145
  %v437 = vunpack.c.l.b16 %v146
  %v438 = vpack.c.b16 %v311, %v310
  %v439 = vpack.c.b16 %v313, %v312
  %v440 = vpack.c.b16 %v315, %v314
  %v441 = vpack.c.b16 %v317, %v316
  %v442 = vpack.c.b16 %v319, %v318
  %v443 = vpack.c.b16 %v321, %v320
  %v444 = vpack.c.b16 %v323, %v322
  %v445 = vpack.c.b16 %v325, %v324
  %v446 = vpack.c.b16 %v327, %v326
  %v447 = vpack.c.b16 %v329, %v328
  %v448 = vpack.c.b16 %v331, %v330
  %v449 = vpack.c.b16 %v333, %v332
  %v450 = vpack.c.b16 %v335, %v334
  %v451 = vpack.c.b16 %v337, %v336
  %v452 = vpack.c.b16 %v339, %v338
  %v453 = vpack.c.b16 %v341, %v340
  %v454 = vpack.c.b16 %v343, %v342
  %v455 = vpack.c.b16 %v345, %v344
  %v456 = vpack.c.b16 %v347, %v346
  %v457 = vpack.c.b16 %v349, %v348
  %v458 = vpack.c.b16 %v351, %v350
  %v459 = vpack.c.b16 %v353, %v352
  %v460 = vpack.c.b16 %v355, %v354
  %v461 = vpack.c.b16 %v357, %v356
  %v462 = vpack.c.b16 %v359, %v358
  %v463 = vpack.c.b16 %v361, %v360
  %v464 = vpack.c.b16 %v363, %v362
  %v465 = vpack.c.b16 %v365, %v364
  %v466 = vpack.c.b16 %v367, %v366
  %v467 = vpack.c.b16 %v369, %v368
  %v468 = vpack.c.b16 %v371, %v370
  %v469 = vpack.c.b16 %v373, %v372
  %v470 = vpack.c.b16 %v375, %v374
  %v471 = vpack.c.b16 %v377, %v376
  %v472 = vpack.c.b16 %v379, %v378
  %v473 = vpack.c.b16 %v381, %v380
  %v474 = vpack.c.b16 %v383, %v382
  %v475 = vpack.c.b16 %v385, %v384
  %v476 = vpack.c.b16 %v387, %v386
  %v477 = vpack.c.b16 %v389, %v388
  %v478 = vpack.c.b16 %v391, %v390
  %v479 = vpack.c.b16 %v393, %v392
  %v480 = vpack.c.b16 %v395, %v394
  %v481 = vpack.c.b16 %v397, %v396
  %v482 = vpack.c.b16 %v399, %v398
  %v483 = vpack.c.b16 %v401, %v400
  %v484 = vpack.c.b16 %v403, %v402
  %v485 = vpack.c.b16 %v405, %v404
  %v486 = vpack.c.b16 %v407, %v406
  %v487 = vpack.c.b16 %v409, %v408
  %v488 = vpack.c.b16 %v411, %v410
  %v489 = vpack.c.b16 %v413, %v412
  %v490 = vpack.c.b16 %v415, %v414
  %v491 = vpack.c.b16 %v417, %v416
  %v492 = vpack.c.b16 %v419, %v418
  %v493 = vpack.c.b16 %v421, %v420
  %v494 = vpack.c.b16 %v423, %v422
  %v495 = vpack.c.b16 %v425, %v424
  %v496 = vpack.c.b16 %v427, %v426
  %v497 = vpack.c.b16 %v429, %v428
  %v498 = vpack.c.b16 %v431, %v430
  %v499 = vpack.c.b16 %v433, %v432
  %v500 = vpack.c.b16 %v435, %v434
  %v501 = vpack.c.b16 %v437, %v436
  %566 = vmatprep.subr.bf16.mxu0 0
  %567 = vmatpush1.bf16.msra.mxu0 %v438
  %568 = vmatprep.subr.bf16.mxu0 0
  %569 = vmatpush1.bf16.msra.mxu0 %v439
  %570 = vmatprep.subr.bf16.mxu0 0
  %571 = vmatpush1.bf16.msra.mxu0 %v440
  %572 = vmatprep.subr.bf16.mxu0 0
  %573 = vmatpush1.bf16.msra.mxu0 %v441
  %574 = vmatprep.subr.bf16.mxu0 0
  %575 = vmatpush1.bf16.msra.mxu0 %v442
  %576 = vmatprep.subr.bf16.mxu0 0
  %577 = vmatpush1.bf16.msra.mxu0 %v443
  %578 = vmatprep.subr.bf16.mxu0 0
  %579 = vmatpush1.bf16.msra.mxu0 %v444
  %580 = vmatprep.subr.bf16.mxu0 0
  %581 = vmatpush1.bf16.msra.mxu0 %v445
  %582 = vmatprep.subr.bf16.mxu0 0
  %583 = vmatpush1.bf16.msra.mxu0 %v446
  %584 = vmatprep.subr.bf16.mxu0 0
  %585 = vmatpush1.bf16.msra.mxu0 %v447
  %586 = vmatprep.subr.bf16.mxu0 0
  %587 = vmatpush1.bf16.msra.mxu0 %v448
  %588 = vmatprep.subr.bf16.mxu0 0
  %589 = vmatpush1.bf16.msra.mxu0 %v449
  %590 = vmatprep.subr.bf16.mxu0 0
  %591 = vmatpush1.bf16.msra.mxu0 %v450
  %592 = vmatprep.subr.bf16.mxu0 0
  %593 = vmatpush1.bf16.msra.mxu0 %v451
  %594 = vmatprep.subr.bf16.mxu0 0
  %595 = vmatpush1.bf16.msra.mxu0 %v452
  %596 = vmatprep.subr.bf16.mxu0 0
  %597 = vmatpush1.bf16.msra.mxu0 %v453
  %598 = vmatprep.mubr.bf16.mxu0 %v167
  %599 = vmatmul.mubr.bf16.gmra.mrb[0].mxu0 %v166
  %v600 = vpop.f32.mrb[0].mxu0
  %v601 = vadd.f32 %v152, %v600
  %v602 = vpop.f32.mrb[0].mxu0
  %v603 = vpop.f32.mrb[0].mxu0
  %v604 = vpop.f32.mrb[0].mxu0
  %605 = vdwg.mxu0
  %606 = vmatprep.subr.bf16.mxu0 0
  %607 = vmatpush1.bf16.msra.mxu0 %v454
  %608 = vmatprep.subr.bf16.mxu0 0
  %609 = vmatpush1.bf16.msra.mxu0 %v455
  %610 = vmatprep.subr.bf16.mxu0 0
  %611 = vmatpush1.bf16.msra.mxu0 %v456
  %612 = vmatprep.subr.bf16.mxu0 0
  %613 = vmatpush1.bf16.msra.mxu0 %v457
  %614 = vmatprep.subr.bf16.mxu0 0
  %615 = vmatpush1.bf16.msra.mxu0 %v458
  %616 = vmatprep.subr.bf16.mxu0 0
  %617 = vmatpush1.bf16.msra.mxu0 %v459
  %618 = vmatprep.subr.bf16.mxu0 0
  %619 = vmatpush1.bf16.msra.mxu0 %v460
  %620 = vmatprep.subr.bf16.mxu0 0
  %621 = vmatpush1.bf16.msra.mxu0 %v461
  %622 = vmatprep.subr.bf16.mxu0 0
  %623 = vmatpush1.bf16.msra.mxu0 %v462
  %624 = vmatprep.subr.bf16.mxu0 0
  %625 = vmatpush1.bf16.msra.mxu0 %v463
  %626 = vmatprep.subr.bf16.mxu0 0
  %627 = vmatpush1.bf16.msra.mxu0 %v464
  %628 = vmatprep.subr.bf16.mxu0 0
  %629 = vmatpush1.bf16.msra.mxu0 %v465
  %630 = vmatprep.subr.bf16.mxu0 0
  %631 = vmatpush1.bf16.msra.mxu0 %v466
  %632 = vmatprep.subr.bf16.mxu0 0
  %633 = vmatpush1.bf16.msra.mxu0 %v467
  %634 = vmatprep.subr.bf16.mxu0 0
  %635 = vmatpush1.bf16.msra.mxu0 %v468
  %636 = vmatprep.subr.bf16.mxu0 0
  %637 = vmatpush1.bf16.msra.mxu0 %v469
  %638 = vmatprep.mubr.bf16.mxu0 %v169
  %639 = vmatmul.mubr.bf16.gmra.mrb[0].mxu0 %v168
  %v640 = vpop.f32.mrb[0].mxu0
  %v641 = vadd.f32 %v601, %v640
  %v642 = vpop.f32.mrb[0].mxu0
  %v643 = vpop.f32.mrb[0].mxu0
  %v644 = vpop.f32.mrb[0].mxu0
  %645 = vdwg.mxu0
  %646 = vmatprep.subr.bf16.mxu0 0
  %647 = vmatpush1.bf16.msra.mxu0 %v470
  %648 = vmatprep.subr.bf16.mxu0 0
  %649 = vmatpush1.bf16.msra.mxu0 %v471
  %650 = vmatprep.subr.bf16.mxu0 0
  %651 = vmatpush1.bf16.msra.mxu0 %v472
  %652 = vmatprep.subr.bf16.mxu0 0
  %653 = vmatpush1.bf16.msra.mxu0 %v473
  %654 = vmatprep.subr.bf16.mxu0 0
  %655 = vmatpush1.bf16.msra.mxu0 %v474
  %656 = vmatprep.subr.bf16.mxu0 0
  %657 = vmatpush1.bf16.msra.mxu0 %v475
  %658 = vmatprep.subr.bf16.mxu0 0
  %659 = vmatpush1.bf16.msra.mxu0 %v476
  %660 = vmatprep.subr.bf16.mxu0 0
  %661 = vmatpush1.bf16.msra.mxu0 %v477
  %662 = vmatprep.subr.bf16.mxu0 0
  %663 = vmatpush1.bf16.msra.mxu0 %v478
  %664 = vmatprep.subr.bf16.mxu0 0
  %665 = vmatpush1.bf16.msra.mxu0 %v479
  %666 = vmatprep.subr.bf16.mxu0 0
  %667 = vmatpush1.bf16.msra.mxu0 %v480
  %668 = vmatprep.subr.bf16.mxu0 0
  %669 = vmatpush1.bf16.msra.mxu0 %v481
  %670 = vmatprep.subr.bf16.mxu0 0
  %671 = vmatpush1.bf16.msra.mxu0 %v482
  %672 = vmatprep.subr.bf16.mxu0 0
  %673 = vmatpush1.bf16.msra.mxu0 %v483
  %674 = vmatprep.subr.bf16.mxu0 0
  %675 = vmatpush1.bf16.msra.mxu0 %v484
  %676 = vmatprep.subr.bf16.mxu0 0
  %677 = vmatpush1.bf16.msra.mxu0 %v485
  %678 = vmatprep.mubr.bf16.mxu0 %v171
  %679 = vmatmul.mubr.bf16.gmra.mrb[0].mxu0 %v170
  %v680 = vpop.f32.mrb[0].mxu0
  %v681 = vadd.f32 %v641, %v680
  %v682 = vpop.f32.mrb[0].mxu0
  %v683 = vpop.f32.mrb[0].mxu0
  %v684 = vpop.f32.mrb[0].mxu0
  %685 = vdwg.mxu0
  %686 = vmatprep.subr.bf16.mxu0 0
  %687 = vmatpush1.bf16.msra.mxu0 %v486
  %688 = vmatprep.subr.bf16.mxu0 0
  %689 = vmatpush1.bf16.msra.mxu0 %v487
  %690 = vmatprep.subr.bf16.mxu0 0
  %691 = vmatpush1.bf16.msra.mxu0 %v488
  %692 = vmatprep.subr.bf16.mxu0 0
  %693 = vmatpush1.bf16.msra.mxu0 %v489
  %694 = vmatprep.subr.bf16.mxu0 0
  %695 = vmatpush1.bf16.msra.mxu0 %v490
  %696 = vmatprep.subr.bf16.mxu0 0
  %697 = vmatpush1.bf16.msra.mxu0 %v491
  %698 = vmatprep.subr.bf16.mxu0 0
  %699 = vmatpush1.bf16.msra.mxu0 %v492
  %700 = vmatprep.subr.bf16.mxu0 0
  %701 = vmatpush1.bf16.msra.mxu0 %v493
  %702 = vmatprep.subr.bf16.mxu0 0
  %703 = vmatpush1.bf16.msra.mxu0 %v494
  %704 = vmatprep.subr.bf16.mxu0 0
  %705 = vmatpush1.bf16.msra.mxu0 %v495
  %706 = vmatprep.subr.bf16.mxu0 0
  %707 = vmatpush1.bf16.msra.mxu0 %v496
  %708 = vmatprep.subr.bf16.mxu0 0
  %709 = vmatpush1.bf16.msra.mxu0 %v497
  %710 = vmatprep.subr.bf16.mxu0 0
  %711 = vmatpush1.bf16.msra.mxu0 %v498
  %712 = vmatprep.subr.bf16.mxu0 0
  %713 = vmatpush1.bf16.msra.mxu0 %v499
  %714 = vmatprep.subr.bf16.mxu0 0
  %715 = vmatpush1.bf16.msra.mxu0 %v500
  %716 = vmatprep.subr.bf16.mxu0 0
  %717 = vmatpush1.bf16.msra.mxu0 %v501
  %718 = vmatprep.mubr.bf16.mxu0 %v173
  %719 = vmatmul.mubr.bf16.gmra.mrb[0].mxu0 %v172
  %v720 = vpop.f32.mrb[0].mxu0
  %v721 = vadd.f32 %v681, %v720
  %v722 = vpop.f32.mrb[0].mxu0
  %v723 = vpop.f32.mrb[0].mxu0
  %v724 = vpop.f32.mrb[0].mxu0
  %725 = vdwg.mxu0
  %vm726 = vcmp.ge.f32.partialorder %v721, 0.0
  %v727 = vmul.f32 %v721, 0.2
  %v728 = vsel %vm726, %v721, %v727
  %v729 = vpack.c.bf16 %v728, %v728
  %730 = vst [vmem:[%s3] sm:$0xf] %v729
  // Predicated region
  $region14: #{_lambda_.4} parent=0 // pred_check
    _
  $region15: #{_lambda_.4} parent=0 // pred_check_branch
    %732 = sbr.rel (0) target = $region17
  $region16: #{_lambda_.4} parent=0 // pred_region
    _
  $region17: #{_lambda_.4} parent=0 // pred_fallthru
    _
  // Predicated region
  $region18: #{_lambda_.4} parent=0 // pred_check
    _
  $region19: #{_lambda_.4} parent=0 // pred_check_branch
    %734 = sbr.rel (0) target = $region21
  $region20: #{_lambda_.4} parent=0 // pred_region
    _
  $region21: #{_lambda_.4} parent=0 // pred_fallthru
    _

// kernel: _lambda_.3
$region0: #{_lambda_.3}
  #allocation0 [shape = 'u32[]', space=smem, size = 0x4, offset = 0x4, fixed_abs, tag = 'smem constant byte address 0x4 - core index']
  #allocation1 [shape = 'u32[144,128]{1,0:T(1,128)}', space=vmem, size = 0x12000, scoped, tag = 'internal scratch']
  %s0 = inlined_call_operand.vmem [shape: bf16[16,512], index: 0, kind: input, shape index: {}]
  %s1 = inlined_call_operand.vmem [shape: bf16[512,128], index: 1, kind: input, shape index: {}]
  %s2 = inlined_call_operand.vmem [shape: f32[1,128], index: 2, kind: input, shape index: {}]
  %s3 = inlined_call_operand.vmem [shape: bf16[16,128], index: 3, kind: output, shape index: {}]
  %s4 = sld [smem:[#allocation0]]
  $region22: #{_lambda_.3} parent=0
    _
  %s6 = ssub.s32 1, %s4
  %s7 = scalar_select 0, %s6, %s4
  // Predicated region
  $region2: #{_lambda_.3} parent=0 // pred_check
    _
  $region3: #{_lambda_.3} parent=0 // pred_check_branch
    %9 = sbr.rel (0) target = $region5
  $region4: #{_lambda_.3} parent=0 // pred_region
    _
  $region5: #{_lambda_.3} parent=0 // pred_fallthru
    _
  // Predicated region
  $region6: #{_lambda_.3} parent=0 // pred_check
    _
  $region7: #{_lambda_.3} parent=0 // pred_check_branch
    %11 = sbr.rel (0) target = $region9
  $region8: #{_lambda_.3} parent=0 // pred_region
    _
  $region9: #{_lambda_.3} parent=0 // pred_fallthru
    _
  // Predicated region
  $region10: #{_lambda_.3} parent=0 // pred_check
    _
  $region11: #{_lambda_.3} parent=0 // pred_check_branch
    %13 = sbr.rel (0) target = $region13
  $region12: #{_lambda_.3} parent=0 // pred_region
    _
  $region13: #{_lambda_.3} parent=0 // pred_fallthru
    _
  %v15 = vld [vmem:[%s0] sm:$0xff]
  %v16 = vld [vmem:[%s0 + $0x8] sm:$0xff]
  %v17 = vld [vmem:[%s0 + $0x10] sm:$0xff]
  %v18 = vld [vmem:[%s0 + $0x18] sm:$0xff]
  %v19 = vld [vmem:[%s1] sm:$0xf]
  %v20 = vld [vmem:[%s1 + $0x4] sm:$0xf]
  %v21 = vld [vmem:[%s1 + $0x8] sm:$0xf]
  %v22 = vld [vmem:[%s1 + $0xc] sm:$0xf]
  %v23 = vld [vmem:[%s1 + $0x10] sm:$0xf]
  %v24 = vld [vmem:[%s1 + $0x14] sm:$0xf]
  %v25 = vld [vmem:[%s1 + $0x18] sm:$0xf]
  %v26 = vld [vmem:[%s1 + $0x1c] sm:$0xf]
  %v27 = vld [vmem:[%s1 + $0x20] sm:$0xf]
  %v28 = vld [vmem:[%s1 + $0x24] sm:$0xf]
  %v29 = vld [vmem:[%s1 + $0x28] sm:$0xf]
  %v30 = vld [vmem:[%s1 + $0x2c] sm:$0xf]
  %v31 = vld [vmem:[%s1 + $0x30] sm:$0xf]
  %v32 = vld [vmem:[%s1 + $0x34] sm:$0xf]
  %v33 = vld [vmem:[%s1 + $0x38] sm:$0xf]
  %v34 = vld [vmem:[%s1 + $0x3c] sm:$0xf]
  %v35 = vld [vmem:[%s1 + $0x40] sm:$0xf]
  %v36 = vld [vmem:[%s1 + $0x44] sm:$0xf]
  %v37 = vld [vmem:[%s1 + $0x48] sm:$0xf]
  %v38 = vld [vmem:[%s1 + $0x4c] sm:$0xf]
  %v39 = vld [vmem:[%s1 + $0x50] sm:$0xf]
  %v40 = vld [vmem:[%s1 + $0x54] sm:$0xf]
  %v41 = vld [vmem:[%s1 + $0x58] sm:$0xf]
  %v42 = vld [vmem:[%s1 + $0x5c] sm:$0xf]
  %v43 = vld [vmem:[%s1 + $0x60] sm:$0xf]
  %v44 = vld [vmem:[%s1 + $0x64] sm:$0xf]
  %v45 = vld [vmem:[%s1 + $0x68] sm:$0xf]
  %v46 = vld [vmem:[%s1 + $0x6c] sm:$0xf]
  %v47 = vld [vmem:[%s1 + $0x70] sm:$0xf]
  %v48 = vld [vmem:[%s1 + $0x74] sm:$0xf]
  %v49 = vld [vmem:[%s1 + $0x78] sm:$0xf]
  %v50 = vld [vmem:[%s1 + $0x7c] sm:$0xf]
  %v51 = vld [vmem:[%s1 + $0x80] sm:$0xf]
  %v52 = vld [vmem:[%s1 + $0x84] sm:$0xf]
  %v53 = vld [vmem:[%s1 + $0x88] sm:$0xf]
  %v54 = vld [vmem:[%s1 + $0x8c] sm:$0xf]
  %v55 = vld [vmem:[%s1 + $0x90] sm:$0xf]
  %v56 = vld [vmem:[%s1 + $0x94] sm:$0xf]
  %v57 = vld [vmem:[%s1 + $0x98] sm:$0xf]
  %v58 = vld [vmem:[%s1 + $0x9c] sm:$0xf]
  %v59 = vld [vmem:[%s1 + $0xa0] sm:$0xf]
  %v60 = vld [vmem:[%s1 + $0xa4] sm:$0xf]
  %v61 = vld [vmem:[%s1 + $0xa8] sm:$0xf]
  %v62 = vld [vmem:[%s1 + $0xac] sm:$0xf]
  %v63 = vld [vmem:[%s1 + $0xb0] sm:$0xf]
  %v64 = vld [vmem:[%s1 + $0xb4] sm:$0xf]
  %v65 = vld [vmem:[%s1 + $0xb8] sm:$0xf]
  %v66 = vld [vmem:[%s1 + $0xbc] sm:$0xf]
  %v67 = vld [vmem:[%s1 + $0xc0] sm:$0xf]
  %v68 = vld [vmem:[%s1 + $0xc4] sm:$0xf]
  %v69 = vld [vmem:[%s1 + $0xc8] sm:$0xf]
  %v70 = vld [vmem:[%s1 + $0xcc] sm:$0xf]
  %v71 = vld [vmem:[%s1 + $0xd0] sm:$0xf]
  %v72 = vld [vmem:[%s1 + $0xd4] sm:$0xf]
  %v73 = vld [vmem:[%s1 + $0xd8] sm:$0xf]
  %v74 = vld [vmem:[%s1 + $0xdc] sm:$0xf]
  %v75 = vld [vmem:[%s1 + $0xe0] sm:$0xf]
  %v76 = vld [vmem:[%s1 + $0xe4] sm:$0xf]
  %v77 = vld [vmem:[%s1 + $0xe8] sm:$0xf]
  %v78 = vld [vmem:[%s1 + $0xec] sm:$0xf]
  %v79 = vld [vmem:[%s1 + $0xf0] sm:$0xf]
  %v80 = vld [vmem:[%s1 + $0xf4] sm:$0xf]
  %v81 = vld [vmem:[%s1 + $0xf8] sm:$0xf]
  %v82 = vld [vmem:[%s1 + $0xfc] sm:$0xf]
  %v83 = vld [vmem:[%s2] sm:$0x1]
  %v85 = vlaneseq
  %v86 = vshrl.u32 %v85, 7
  %v87 = vsub.s32 0, %v86
  %v88 = vrot.slane %v83, %v87
  %v94 = vunpack.c.l.b16 %v15
  %v95 = vunpack.c.h.b16 %v15
  %v96 = vunpack.c.l.b16 %v16
  %v97 = vunpack.c.h.b16 %v16
  %v98 = vunpack.c.l.b16 %v17
  %v99 = vunpack.c.h.b16 %v17
  %v100 = vunpack.c.l.b16 %v18
  %v101 = vunpack.c.h.b16 %v18
  %v102 = vpack.c.b16 %v98, %v94
  %v103 = vpack.c.b16 %v99, %v95
  %v104 = vpack.c.b16 %v100, %v96
  %v105 = vpack.c.b16 %v101, %v97
  %v174 = vunpack.c.l.b16 %v19
  %v175 = vunpack.c.l.b16 %v20
  %v176 = vunpack.c.l.b16 %v21
  %v177 = vunpack.c.l.b16 %v22
  %v178 = vunpack.c.l.b16 %v23
  %v179 = vunpack.c.l.b16 %v24
  %v180 = vunpack.c.l.b16 %v25
  %v181 = vunpack.c.l.b16 %v26
  %v182 = vunpack.c.l.b16 %v27
  %v183 = vunpack.c.l.b16 %v28
  %v184 = vunpack.c.l.b16 %v29
  %v185 = vunpack.c.l.b16 %v30
  %v186 = vunpack.c.l.b16 %v31
  %v187 = vunpack.c.l.b16 %v32
  %v188 = vunpack.c.l.b16 %v33
  %v189 = vunpack.c.l.b16 %v34
  %v190 = vunpack.c.l.b16 %v35
  %v191 = vunpack.c.l.b16 %v36
  %v192 = vunpack.c.l.b16 %v37
  %v193 = vunpack.c.l.b16 %v38
  %v194 = vunpack.c.l.b16 %v39
  %v195 = vunpack.c.l.b16 %v40
  %v196 = vunpack.c.l.b16 %v41
  %v197 = vunpack.c.l.b16 %v42
  %v198 = vunpack.c.l.b16 %v43
  %v199 = vunpack.c.l.b16 %v44
  %v200 = vunpack.c.l.b16 %v45
  %v201 = vunpack.c.l.b16 %v46
  %v202 = vunpack.c.l.b16 %v47
  %v203 = vunpack.c.l.b16 %v48
  %v204 = vunpack.c.l.b16 %v49
  %v205 = vunpack.c.l.b16 %v50
  %v206 = vunpack.c.l.b16 %v51
  %v207 = vunpack.c.l.b16 %v52
  %v208 = vunpack.c.l.b16 %v53
  %v209 = vunpack.c.l.b16 %v54
  %v210 = vunpack.c.l.b16 %v55
  %v211 = vunpack.c.l.b16 %v56
  %v212 = vunpack.c.l.b16 %v57
  %v213 = vunpack.c.l.b16 %v58
  %v214 = vunpack.c.l.b16 %v59
  %v215 = vunpack.c.l.b16 %v60
  %v216 = vunpack.c.l.b16 %v61
  %v217 = vunpack.c.l.b16 %v62
  %v218 = vunpack.c.l.b16 %v63
  %v219 = vunpack.c.l.b16 %v64
  %v220 = vunpack.c.l.b16 %v65
  %v221 = vunpack.c.l.b16 %v66
  %v222 = vunpack.c.l.b16 %v67
  %v223 = vunpack.c.l.b16 %v68
  %v224 = vunpack.c.l.b16 %v69
  %v225 = vunpack.c.l.b16 %v70
  %v226 = vunpack.c.l.b16 %v71
  %v227 = vunpack.c.l.b16 %v72
  %v228 = vunpack.c.l.b16 %v73
  %v229 = vunpack.c.l.b16 %v74
  %v230 = vunpack.c.l.b16 %v75
  %v231 = vunpack.c.l.b16 %v76
  %v232 = vunpack.c.l.b16 %v77
  %v233 = vunpack.c.l.b16 %v78
  %v234 = vunpack.c.l.b16 %v79
  %v235 = vunpack.c.l.b16 %v80
  %v236 = vunpack.c.l.b16 %v81
  %v237 = vunpack.c.l.b16 %v82
  %v238 = vpack.c.b16 %v175, %v174
  %v239 = vpack.c.b16 %v177, %v176
  %v240 = vpack.c.b16 %v179, %v178
  %v241 = vpack.c.b16 %v181, %v180
  %v242 = vpack.c.b16 %v183, %v182
  %v243 = vpack.c.b16 %v185, %v184
  %v244 = vpack.c.b16 %v187, %v186
  %v245 = vpack.c.b16 %v189, %v188
  %v246 = vpack.c.b16 %v191, %v190
  %v247 = vpack.c.b16 %v193, %v192
  %v248 = vpack.c.b16 %v195, %v194
  %v249 = vpack.c.b16 %v197, %v196
  %v250 = vpack.c.b16 %v199, %v198
  %v251 = vpack.c.b16 %v201, %v200
  %v252 = vpack.c.b16 %v203, %v202
  %v253 = vpack.c.b16 %v205, %v204
  %v254 = vpack.c.b16 %v207, %v206
  %v255 = vpack.c.b16 %v209, %v208
  %v256 = vpack.c.b16 %v211, %v210
  %v257 = vpack.c.b16 %v213, %v212
  %v258 = vpack.c.b16 %v215, %v214
  %v259 = vpack.c.b16 %v217, %v216
  %v260 = vpack.c.b16 %v219, %v218
  %v261 = vpack.c.b16 %v221, %v220
  %v262 = vpack.c.b16 %v223, %v222
  %v263 = vpack.c.b16 %v225, %v224
  %v264 = vpack.c.b16 %v227, %v226
  %v265 = vpack.c.b16 %v229, %v228
  %v266 = vpack.c.b16 %v231, %v230
  %v267 = vpack.c.b16 %v233, %v232
  %v268 = vpack.c.b16 %v235, %v234
  %v269 = vpack.c.b16 %v237, %v236
  %302 = vmatprep.subr.bf16.mxu0 0
  %303 = vmatpush1.bf16.msra.mxu0 %v238
  %304 = vmatprep.subr.bf16.mxu0 0
  %305 = vmatpush1.bf16.msra.mxu0 %v239
  %306 = vmatprep.subr.bf16.mxu0 0
  %307 = vmatpush1.bf16.msra.mxu0 %v240
  %308 = vmatprep.subr.bf16.mxu0 0
  %309 = vmatpush1.bf16.msra.mxu0 %v241
  %310 = vmatprep.subr.bf16.mxu0 0
  %311 = vmatpush1.bf16.msra.mxu0 %v242
  %312 = vmatprep.subr.bf16.mxu0 0
  %313 = vmatpush1.bf16.msra.mxu0 %v243
  %314 = vmatprep.subr.bf16.mxu0 0
  %315 = vmatpush1.bf16.msra.mxu0 %v244
  %316 = vmatprep.subr.bf16.mxu0 0
  %317 = vmatpush1.bf16.msra.mxu0 %v245
  %318 = vmatprep.subr.bf16.mxu0 0
  %319 = vmatpush1.bf16.msra.mxu0 %v246
  %320 = vmatprep.subr.bf16.mxu0 0
  %321 = vmatpush1.bf16.msra.mxu0 %v247
  %322 = vmatprep.subr.bf16.mxu0 0
  %323 = vmatpush1.bf16.msra.mxu0 %v248
  %324 = vmatprep.subr.bf16.mxu0 0
  %325 = vmatpush1.bf16.msra.mxu0 %v249
  %326 = vmatprep.subr.bf16.mxu0 0
  %327 = vmatpush1.bf16.msra.mxu0 %v250
  %328 = vmatprep.subr.bf16.mxu0 0
  %329 = vmatpush1.bf16.msra.mxu0 %v251
  %330 = vmatprep.subr.bf16.mxu0 0
  %331 = vmatpush1.bf16.msra.mxu0 %v252
  %332 = vmatprep.subr.bf16.mxu0 0
  %333 = vmatpush1.bf16.msra.mxu0 %v253
  %334 = vmatprep.mubr.bf16.mxu0 %v103
  %335 = vmatmul.mubr.bf16.gmra.mrb[0].mxu0 %v102
  %v336 = vpop.f32.mrb[0].mxu0
  %v337 = vadd.f32 %v88, %v336
  %v338 = vpop.f32.mrb[0].mxu0
  %v339 = vpop.f32.mrb[0].mxu0
  %v340 = vadd.f32 %v88, %v339
  %v341 = vpop.f32.mrb[0].mxu0
  %342 = vdwg.mxu0
  %343 = vmatprep.subr.bf16.mxu0 0
  %344 = vmatpush1.bf16.msra.mxu0 %v254
  %345 = vmatprep.subr.bf16.mxu0 0
  %346 = vmatpush1.bf16.msra.mxu0 %v255
  %347 = vmatprep.subr.bf16.mxu0 0
  %348 = vmatpush1.bf16.msra.mxu0 %v256
  %349 = vmatprep.subr.bf16.mxu0 0
  %350 = vmatpush1.bf16.msra.mxu0 %v257
  %351 = vmatprep.subr.bf16.mxu0 0
  %352 = vmatpush1.bf16.msra.mxu0 %v258
  %353 = vmatprep.subr.bf16.mxu0 0
  %354 = vmatpush1.bf16.msra.mxu0 %v259
  %355 = vmatprep.subr.bf16.mxu0 0
  %356 = vmatpush1.bf16.msra.mxu0 %v260
  %357 = vmatprep.subr.bf16.mxu0 0
  %358 = vmatpush1.bf16.msra.mxu0 %v261
  %359 = vmatprep.subr.bf16.mxu0 0
  %360 = vmatpush1.bf16.msra.mxu0 %v262
  %361 = vmatprep.subr.bf16.mxu0 0
  %362 = vmatpush1.bf16.msra.mxu0 %v263
  %363 = vmatprep.subr.bf16.mxu0 0
  %364 = vmatpush1.bf16.msra.mxu0 %v264
  %365 = vmatprep.subr.bf16.mxu0 0
  %366 = vmatpush1.bf16.msra.mxu0 %v265
  %367 = vmatprep.subr.bf16.mxu0 0
  %368 = vmatpush1.bf16.msra.mxu0 %v266
  %369 = vmatprep.subr.bf16.mxu0 0
  %370 = vmatpush1.bf16.msra.mxu0 %v267
  %371 = vmatprep.subr.bf16.mxu0 0
  %372 = vmatpush1.bf16.msra.mxu0 %v268
  %373 = vmatprep.subr.bf16.mxu0 0
  %374 = vmatpush1.bf16.msra.mxu0 %v269
  %375 = vmatprep.mubr.bf16.mxu0 %v105
  %376 = vmatmul.mubr.bf16.gmra.mrb[0].mxu0 %v104
  %v377 = vpop.f32.mrb[0].mxu0
  %v378 = vadd.f32 %v337, %v377
  %v379 = vpop.f32.mrb[0].mxu0
  %v380 = vpop.f32.mrb[0].mxu0
  %v381 = vadd.f32 %v340, %v380
  %v382 = vpop.f32.mrb[0].mxu0
  %383 = vdwg.mxu0
  %vm384 = vcmp.ge.f32.partialorder %v378, 0.0
  %vm385 = vcmp.ge.f32.partialorder %v381, 0.0
  %v386 = vmul.f32 %v378, 0.2
  %v387 = vmul.f32 %v381, 0.2
  %v388 = vsel %vm384, %v378, %v386
  %v389 = vsel %vm385, %v381, %v387
  %v390 = vpack.c.bf16 %v389, %v388
  %v392 = vunpack.c.l.b16 %v390
  %v393 = vunpack.c.h.b16 %v390
  %v394 = vpack.c.b16 %v392, %v392
  %v395 = vpack.c.b16 %v393, %v393
  %398 = vst [vmem:[%s3] sm:$0xf] %v394
  %399 = vst [vmem:[%s3 + $0x4] sm:$0xf] %v395
  // Predicated region
  $region14: #{_lambda_.3} parent=0 // pred_check
    _
  $region15: #{_lambda_.3} parent=0 // pred_check_branch
    %401 = sbr.rel (0) target = $region17
  $region16: #{_lambda_.3} parent=0 // pred_region
    _
  $region17: #{_lambda_.3} parent=0 // pred_fallthru
    _
  // Predicated region
  $region18: #{_lambda_.3} parent=0 // pred_check
    _
  $region19: #{_lambda_.3} parent=0 // pred_check_branch
    %403 = sbr.rel (0) target = $region21
  $region20: #{_lambda_.3} parent=0 // pred_region
    _
  $region21: #{_lambda_.3} parent=0 // pred_fallthru
    _

// kernel: _lambda_.5
$region0: #{_lambda_.5}
  #allocation0 [shape = 'u32[]', space=smem, size = 0x4, offset = 0x4, fixed_abs, tag = 'smem constant byte address 0x4 - core index']
  #allocation1 [shape = 'u32[144,128]{1,0:T(1,128)}', space=vmem, size = 0x12000, scoped, tag = 'internal scratch']
  %s0 = inlined_call_operand.vmem [shape: bf16[4,1024], index: 0, kind: input, shape index: {}]
  %s1 = inlined_call_operand.vmem [shape: bf16[1024,128], index: 1, kind: input, shape index: {}]
  %s2 = inlined_call_operand.vmem [shape: f32[1,128], index: 2, kind: input, shape index: {}]
  %s3 = inlined_call_operand.vmem [shape: bf16[128,2], index: 3, kind: input, shape index: {}]
  %s4 = inlined_call_operand.vmem [shape: f32[1,2], index: 4, kind: input, shape index: {}]
  %s5 = inlined_call_operand.hbm [shape: f32[4,2], index: 5, kind: output, shape index: {}]
  %s6 = sld [smem:[#allocation0]]
  $region30: #{_lambda_.5} parent=0
    _
  %s8 = ssub.s32 1, %s6
  %s9 = scalar_select 0, %s8, %s6
  $region1: #{_lambda_.5} parent=0
    #allocation2 [shape = 'u8[2048]{0}', space=vmem, size = 0x800, scoped, tag = 'output window, operand 0, single buffered']
    #allocation3 [shape = 's32[1]{0}', space=sflag, size = 0x4, scoped, tag = 'scoped memory for _lambda_.5']
    %10 = vsyncpa [#allocation3], 0
    // Predicated region
    $region2: #{_lambda_.5} parent=1 // pred_check
      _
    $region3: #{_lambda_.5} parent=1 // pred_check_branch
      %12 = sbr.rel (0) target = $region5
    $region4: #{_lambda_.5} parent=1 // pred_region
      _
    $region5: #{_lambda_.5} parent=1 // pred_fallthru
      _
    // Predicated region
    $region6: #{_lambda_.5} parent=1 // pred_check
      _
    $region7: #{_lambda_.5} parent=1 // pred_check_branch
      %14 = sbr.rel (0) target = $region9
    $region8: #{_lambda_.5} parent=1 // pred_region
      _
    $region9: #{_lambda_.5} parent=1 // pred_fallthru
      _
    // Predicated region
    $region10: #{_lambda_.5} parent=1 // pred_check
      _
    $region11: #{_lambda_.5} parent=1 // pred_check_branch
      %16 = sbr.rel (0) target = $region13
    $region12: #{_lambda_.5} parent=1 // pred_region
      _
    $region13: #{_lambda_.5} parent=1 // pred_fallthru
      _
    // Predicated region
    $region14: #{_lambda_.5} parent=1 // pred_check
      _
    $region15: #{_lambda_.5} parent=1 // pred_check_branch
      %18 = sbr.rel (0) target = $region17
    $region16: #{_lambda_.5} parent=1 // pred_region
      _
    $region17: #{_lambda_.5} parent=1 // pred_fallthru
      _
    // Predicated region
    $region18: #{_lambda_.5} parent=1 // pred_check
      _
    $region19: #{_lambda_.5} parent=1 // pred_check_branch
      %20 = sbr.rel (0) target = $region21
    $region20: #{_lambda_.5} parent=1 // pred_region
      _
    $region21: #{_lambda_.5} parent=1 // pred_fallthru
      _
    %v22 = vld [vmem:[%s0] sm:$0xff]
    %v23 = vld [vmem:[%s0 + $0x8] sm:$0xff]
    %v24 = vld [vmem:[%s1] sm:$0xf]
    %v25 = vld [vmem:[%s1 + $0x4] sm:$0xf]
    %v26 = vld [vmem:[%s1 + $0x8] sm:$0xf]
    %v27 = vld [vmem:[%s1 + $0xc] sm:$0xf]
    %v28 = vld [vmem:[%s1 + $0x10] sm:$0xf]
    %v29 = vld [vmem:[%s1 + $0x14] sm:$0xf]
    %v30 = vld [vmem:[%s1 + $0x18] sm:$0xf]
    %v31 = vld [vmem:[%s1 + $0x1c] sm:$0xf]
    %v32 = vld [vmem:[%s1 + $0x20] sm:$0xf]
    %v33 = vld [vmem:[%s1 + $0x24] sm:$0xf]
    %v34 = vld [vmem:[%s1 + $0x28] sm:$0xf]
    %v35 = vld [vmem:[%s1 + $0x2c] sm:$0xf]
    %v36 = vld [vmem:[%s1 + $0x30] sm:$0xf]
    %v37 = vld [vmem:[%s1 + $0x34] sm:$0xf]
    %v38 = vld [vmem:[%s1 + $0x38] sm:$0xf]
    %v39 = vld [vmem:[%s1 + $0x3c] sm:$0xf]
    %v40 = vld [vmem:[%s1 + $0x40] sm:$0xf]
    %v41 = vld [vmem:[%s1 + $0x44] sm:$0xf]
    %v42 = vld [vmem:[%s1 + $0x48] sm:$0xf]
    %v43 = vld [vmem:[%s1 + $0x4c] sm:$0xf]
    %v44 = vld [vmem:[%s1 + $0x50] sm:$0xf]
    %v45 = vld [vmem:[%s1 + $0x54] sm:$0xf]
    %v46 = vld [vmem:[%s1 + $0x58] sm:$0xf]
    %v47 = vld [vmem:[%s1 + $0x5c] sm:$0xf]
    %v48 = vld [vmem:[%s1 + $0x60] sm:$0xf]
    %v49 = vld [vmem:[%s1 + $0x64] sm:$0xf]
    %v50 = vld [vmem:[%s1 + $0x68] sm:$0xf]
    %v51 = vld [vmem:[%s1 + $0x6c] sm:$0xf]
    %v52 = vld [vmem:[%s1 + $0x70] sm:$0xf]
    %v53 = vld [vmem:[%s1 + $0x74] sm:$0xf]
    %v54 = vld [vmem:[%s1 + $0x78] sm:$0xf]
    %v55 = vld [vmem:[%s1 + $0x7c] sm:$0xf]
    %v56 = vld [vmem:[%s1 + $0x80] sm:$0xf]
    %v57 = vld [vmem:[%s1 + $0x84] sm:$0xf]
    %v58 = vld [vmem:[%s1 + $0x88] sm:$0xf]
    %v59 = vld [vmem:[%s1 + $0x8c] sm:$0xf]
    %v60 = vld [vmem:[%s1 + $0x90] sm:$0xf]
    %v61 = vld [vmem:[%s1 + $0x94] sm:$0xf]
    %v62 = vld [vmem:[%s1 + $0x98] sm:$0xf]
    %v63 = vld [vmem:[%s1 + $0x9c] sm:$0xf]
    %v64 = vld [vmem:[%s1 + $0xa0] sm:$0xf]
    %v65 = vld [vmem:[%s1 + $0xa4] sm:$0xf]
    %v66 = vld [vmem:[%s1 + $0xa8] sm:$0xf]
    %v67 = vld [vmem:[%s1 + $0xac] sm:$0xf]
    %v68 = vld [vmem:[%s1 + $0xb0] sm:$0xf]
    %v69 = vld [vmem:[%s1 + $0xb4] sm:$0xf]
    %v70 = vld [vmem:[%s1 + $0xb8] sm:$0xf]
    %v71 = vld [vmem:[%s1 + $0xbc] sm:$0xf]
    %v72 = vld [vmem:[%s1 + $0xc0] sm:$0xf]
    %v73 = vld [vmem:[%s1 + $0xc4] sm:$0xf]
    %v74 = vld [vmem:[%s1 + $0xc8] sm:$0xf]
    %v75 = vld [vmem:[%s1 + $0xcc] sm:$0xf]
    %v76 = vld [vmem:[%s1 + $0xd0] sm:$0xf]
    %v77 = vld [vmem:[%s1 + $0xd4] sm:$0xf]
    %v78 = vld [vmem:[%s1 + $0xd8] sm:$0xf]
    %v79 = vld [vmem:[%s1 + $0xdc] sm:$0xf]
    %v80 = vld [vmem:[%s1 + $0xe0] sm:$0xf]
    %v81 = vld [vmem:[%s1 + $0xe4] sm:$0xf]
    %v82 = vld [vmem:[%s1 + $0xe8] sm:$0xf]
    %v83 = vld [vmem:[%s1 + $0xec] sm:$0xf]
    %v84 = vld [vmem:[%s1 + $0xf0] sm:$0xf]
    %v85 = vld [vmem:[%s1 + $0xf4] sm:$0xf]
    %v86 = vld [vmem:[%s1 + $0xf8] sm:$0xf]
    %v87 = vld [vmem:[%s1 + $0xfc] sm:$0xf]
    %v88 = vld [vmem:[%s1 + $0x100] sm:$0xf]
    %v89 = vld [vmem:[%s1 + $0x104] sm:$0xf]
    %v90 = vld [vmem:[%s1 + $0x108] sm:$0xf]
    %v91 = vld [vmem:[%s1 + $0x10c] sm:$0xf]
    %v92 = vld [vmem:[%s1 + $0x110] sm:$0xf]
    %v93 = vld [vmem:[%s1 + $0x114] sm:$0xf]
    %v94 = vld [vmem:[%s1 + $0x118] sm:$0xf]
    %v95 = vld [vmem:[%s1 + $0x11c] sm:$0xf]
    %v96 = vld [vmem:[%s1 + $0x120] sm:$0xf]
    %v97 = vld [vmem:[%s1 + $0x124] sm:$0xf]
    %v98 = vld [vmem:[%s1 + $0x128] sm:$0xf]
    %v99 = vld [vmem:[%s1 + $0x12c] sm:$0xf]
    %v100 = vld [vmem:[%s1 + $0x130] sm:$0xf]
    %v101 = vld [vmem:[%s1 + $0x134] sm:$0xf]
    %v102 = vld [vmem:[%s1 + $0x138] sm:$0xf]
    %v103 = vld [vmem:[%s1 + $0x13c] sm:$0xf]
    %v104 = vld [vmem:[%s1 + $0x140] sm:$0xf]
    %v105 = vld [vmem:[%s1 + $0x144] sm:$0xf]
    %v106 = vld [vmem:[%s1 + $0x148] sm:$0xf]
    %v107 = vld [vmem:[%s1 + $0x14c] sm:$0xf]
    %v108 = vld [vmem:[%s1 + $0x150] sm:$0xf]
    %v109 = vld [vmem:[%s1 + $0x154] sm:$0xf]
    %v110 = vld [vmem:[%s1 + $0x158] sm:$0xf]
    %v111 = vld [vmem:[%s1 + $0x15c] sm:$0xf]
    %v112 = vld [vmem:[%s1 + $0x160] sm:$0xf]
    %v113 = vld [vmem:[%s1 + $0x164] sm:$0xf]
    %v114 = vld [vmem:[%s1 + $0x168] sm:$0xf]
    %v115 = vld [vmem:[%s1 + $0x16c] sm:$0xf]
    %v116 = vld [vmem:[%s1 + $0x170] sm:$0xf]
    %v117 = vld [vmem:[%s1 + $0x174] sm:$0xf]
    %v118 = vld [vmem:[%s1 + $0x178] sm:$0xf]
    %v119 = vld [vmem:[%s1 + $0x17c] sm:$0xf]
    %v120 = vld [vmem:[%s1 + $0x180] sm:$0xf]
    %v121 = vld [vmem:[%s1 + $0x184] sm:$0xf]
    %v122 = vld [vmem:[%s1 + $0x188] sm:$0xf]
    %v123 = vld [vmem:[%s1 + $0x18c] sm:$0xf]
    %v124 = vld [vmem:[%s1 + $0x190] sm:$0xf]
    %v125 = vld [vmem:[%s1 + $0x194] sm:$0xf]
    %v126 = vld [vmem:[%s1 + $0x198] sm:$0xf]
    %v127 = vld [vmem:[%s1 + $0x19c] sm:$0xf]
    %v128 = vld [vmem:[%s1 + $0x1a0] sm:$0xf]
    %v129 = vld [vmem:[%s1 + $0x1a4] sm:$0xf]
    %v130 = vld [vmem:[%s1 + $0x1a8] sm:$0xf]
    %v131 = vld [vmem:[%s1 + $0x1ac] sm:$0xf]
    %v132 = vld [vmem:[%s1 + $0x1b0] sm:$0xf]
    %v133 = vld [vmem:[%s1 + $0x1b4] sm:$0xf]
    %v134 = vld [vmem:[%s1 + $0x1b8] sm:$0xf]
    %v135 = vld [vmem:[%s1 + $0x1bc] sm:$0xf]
    %v136 = vld [vmem:[%s1 + $0x1c0] sm:$0xf]
    %v137 = vld [vmem:[%s1 + $0x1c4] sm:$0xf]
    %v138 = vld [vmem:[%s1 + $0x1c8] sm:$0xf]
    %v139 = vld [vmem:[%s1 + $0x1cc] sm:$0xf]
    %v140 = vld [vmem:[%s1 + $0x1d0] sm:$0xf]
    %v141 = vld [vmem:[%s1 + $0x1d4] sm:$0xf]
    %v142 = vld [vmem:[%s1 + $0x1d8] sm:$0xf]
    %v143 = vld [vmem:[%s1 + $0x1dc] sm:$0xf]
    %v144 = vld [vmem:[%s1 + $0x1e0] sm:$0xf]
    %v145 = vld [vmem:[%s1 + $0x1e4] sm:$0xf]
    %v146 = vld [vmem:[%s1 + $0x1e8] sm:$0xf]
    %v147 = vld [vmem:[%s1 + $0x1ec] sm:$0xf]
    %v148 = vld [vmem:[%s1 + $0x1f0] sm:$0xf]
    %v149 = vld [vmem:[%s1 + $0x1f4] sm:$0xf]
    %v150 = vld [vmem:[%s1 + $0x1f8] sm:$0xf]
    %v151 = vld [vmem:[%s1 + $0x1fc] sm:$0xf]
    %v152 = vld [vmem:[%s2] sm:$0x1]
    %v154 = vlaneseq
    %v155 = vshrl.u32 %v154, 7
    %v156 = vsub.s32 0, %v155
    %v157 = vrot.slane %v152, %v156
    %v161 = vcombine.high %v22, %v22
    %v163 = vunpack.c.l.s4 1983009808
    %v164 = vunpack.c.0.s8 %v163
    %v165 = vlaneseq
    %v166 = vshrl.u32 %v165, 7
    %v167 = vsub.s32 %v164, %v166
    %v168 = vrot.slane %v22, %v167
    %v170 = vunpack.c.l.s4 1983009808
    %v171 = vunpack.c.0.s8 %v170
    %v172 = vlaneseq
    %v173 = vshrl.u32 %v172, 7
    %v174 = vsub.s32 %v171, %v173
    %v175 = vrot.slane %v161, %v174
    %v176 = vcombine.high %v168, %v168
    %v177 = vcombine.high %v175, %v175
    %v178 = vcombine.high %v23, %v23
    %v180 = vunpack.c.l.s4 1983009808
    %v181 = vunpack.c.0.s8 %v180
    %v182 = vlaneseq
    %v183 = vshrl.u32 %v182, 7
    %v184 = vsub.s32 %v181, %v183
    %v185 = vrot.slane %v23, %v184
    %v187 = vunpack.c.l.s4 1983009808
    %v188 = vunpack.c.0.s8 %v187
    %v189 = vlaneseq
    %v190 = vshrl.u32 %v189, 7
    %v191 = vsub.s32 %v188, %v190
    %v192 = vrot.slane %v178, %v191
    %v193 = vcombine.high %v185, %v185
    %v194 = vcombine.high %v192, %v192
    %v331 = vunpack.c.l.b16 %v24
    %v332 = vunpack.c.l.b16 %v25
    %v333 = vunpack.c.l.b16 %v26
    %v334 = vunpack.c.l.b16 %v27
    %v335 = vunpack.c.l.b16 %v28
    %v336 = vunpack.c.l.b16 %v29
    %v337 = vunpack.c.l.b16 %v30
    %v338 = vunpack.c.l.b16 %v31
    %v339 = vunpack.c.l.b16 %v32
    %v340 = vunpack.c.l.b16 %v33
    %v341 = vunpack.c.l.b16 %v34
    %v342 = vunpack.c.l.b16 %v35
    %v343 = vunpack.c.l.b16 %v36
    %v344 = vunpack.c.l.b16 %v37
    %v345 = vunpack.c.l.b16 %v38
    %v346 = vunpack.c.l.b16 %v39
    %v347 = vunpack.c.l.b16 %v40
    %v348 = vunpack.c.l.b16 %v41
    %v349 = vunpack.c.l.b16 %v42
    %v350 = vunpack.c.l.b16 %v43
    %v351 = vunpack.c.l.b16 %v44
    %v352 = vunpack.c.l.b16 %v45
    %v353 = vunpack.c.l.b16 %v46
    %v354 = vunpack.c.l.b16 %v47
    %v355 = vunpack.c.l.b16 %v48
    %v356 = vunpack.c.l.b16 %v49
    %v357 = vunpack.c.l.b16 %v50
    %v358 = vunpack.c.l.b16 %v51
    %v359 = vunpack.c.l.b16 %v52
    %v360 = vunpack.c.l.b16 %v53
    %v361 = vunpack.c.l.b16 %v54
    %v362 = vunpack.c.l.b16 %v55
    %v363 = vunpack.c.l.b16 %v56
    %v364 = vunpack.c.l.b16 %v57
    %v365 = vunpack.c.l.b16 %v58
    %v366 = vunpack.c.l.b16 %v59
    %v367 = vunpack.c.l.b16 %v60
    %v368 = vunpack.c.l.b16 %v61
    %v369 = vunpack.c.l.b16 %v62
    %v370 = vunpack.c.l.b16 %v63
    %v371 = vunpack.c.l.b16 %v64
    %v372 = vunpack.c.l.b16 %v65
    %v373 = vunpack.c.l.b16 %v66
    %v374 = vunpack.c.l.b16 %v67
    %v375 = vunpack.c.l.b16 %v68
    %v376 = vunpack.c.l.b16 %v69
    %v377 = vunpack.c.l.b16 %v70
    %v378 = vunpack.c.l.b16 %v71
    %v379 = vunpack.c.l.b16 %v72
    %v380 = vunpack.c.l.b16 %v73
    %v381 = vunpack.c.l.b16 %v74
    %v382 = vunpack.c.l.b16 %v75
    %v383 = vunpack.c.l.b16 %v76
    %v384 = vunpack.c.l.b16 %v77
    %v385 = vunpack.c.l.b16 %v78
    %v386 = vunpack.c.l.b16 %v79
    %v387 = vunpack.c.l.b16 %v80
    %v388 = vunpack.c.l.b16 %v81
    %v389 = vunpack.c.l.b16 %v82
    %v390 = vunpack.c.l.b16 %v83
    %v391 = vunpack.c.l.b16 %v84
    %v392 = vunpack.c.l.b16 %v85
    %v393 = vunpack.c.l.b16 %v86
    %v394 = vunpack.c.l.b16 %v87
    %v395 = vunpack.c.l.b16 %v88
    %v396 = vunpack.c.l.b16 %v89
    %v397 = vunpack.c.l.b16 %v90
    %v398 = vunpack.c.l.b16 %v91
    %v399 = vunpack.c.l.b16 %v92
    %v400 = vunpack.c.l.b16 %v93
    %v401 = vunpack.c.l.b16 %v94
    %v402 = vunpack.c.l.b16 %v95
    %v403 = vunpack.c.l.b16 %v96
    %v404 = vunpack.c.l.b16 %v97
    %v405 = vunpack.c.l.b16 %v98
    %v406 = vunpack.c.l.b16 %v99
    %v407 = vunpack.c.l.b16 %v100
    %v408 = vunpack.c.l.b16 %v101
    %v409 = vunpack.c.l.b16 %v102
    %v410 = vunpack.c.l.b16 %v103
    %v411 = vunpack.c.l.b16 %v104
    %v412 = vunpack.c.l.b16 %v105
    %v413 = vunpack.c.l.b16 %v106
    %v414 = vunpack.c.l.b16 %v107
    %v415 = vunpack.c.l.b16 %v108
    %v416 = vunpack.c.l.b16 %v109
    %v417 = vunpack.c.l.b16 %v110
    %v418 = vunpack.c.l.b16 %v111
    %v419 = vunpack.c.l.b16 %v112
    %v420 = vunpack.c.l.b16 %v113
    %v421 = vunpack.c.l.b16 %v114
    %v422 = vunpack.c.l.b16 %v115
    %v423 = vunpack.c.l.b16 %v116
    %v424 = vunpack.c.l.b16 %v117
    %v425 = vunpack.c.l.b16 %v118
    %v426 = vunpack.c.l.b16 %v119
    %v427 = vunpack.c.l.b16 %v120
    %v428 = vunpack.c.l.b16 %v121
    %v429 = vunpack.c.l.b16 %v122
    %v430 = vunpack.c.l.b16 %v123
    %v431 = vunpack.c.l.b16 %v124
    %v432 = vunpack.c.l.b16 %v125
    %v433 = vunpack.c.l.b16 %v126
    %v434 = vunpack.c.l.b16 %v127
    %v435 = vunpack.c.l.b16 %v128
    %v436 = vunpack.c.l.b16 %v129
    %v437 = vunpack.c.l.b16 %v130
    %v438 = vunpack.c.l.b16 %v131
    %v439 = vunpack.c.l.b16 %v132
    %v440 = vunpack.c.l.b16 %v133
    %v441 = vunpack.c.l.b16 %v134
    %v442 = vunpack.c.l.b16 %v135
    %v443 = vunpack.c.l.b16 %v136
    %v444 = vunpack.c.l.b16 %v137
    %v445 = vunpack.c.l.b16 %v138
    %v446 = vunpack.c.l.b16 %v139
    %v447 = vunpack.c.l.b16 %v140
    %v448 = vunpack.c.l.b16 %v141
    %v449 = vunpack.c.l.b16 %v142
    %v450 = vunpack.c.l.b16 %v143
    %v451 = vunpack.c.l.b16 %v144
    %v452 = vunpack.c.l.b16 %v145
    %v453 = vunpack.c.l.b16 %v146
    %v454 = vunpack.c.l.b16 %v147
    %v455 = vunpack.c.l.b16 %v148
    %v456 = vunpack.c.l.b16 %v149
    %v457 = vunpack.c.l.b16 %v150
    %v458 = vunpack.c.l.b16 %v151
    %v459 = vpack.c.b16 %v332, %v331
    %v460 = vpack.c.b16 %v334, %v333
    %v461 = vpack.c.b16 %v336, %v335
    %v462 = vpack.c.b16 %v338, %v337
    %v463 = vpack.c.b16 %v340, %v339
    %v464 = vpack.c.b16 %v342, %v341
    %v465 = vpack.c.b16 %v344, %v343
    %v466 = vpack.c.b16 %v346, %v345
    %v467 = vpack.c.b16 %v348, %v347
    %v468 = vpack.c.b16 %v350, %v349
    %v469 = vpack.c.b16 %v352, %v351
    %v470 = vpack.c.b16 %v354, %v353
    %v471 = vpack.c.b16 %v356, %v355
    %v472 = vpack.c.b16 %v358, %v357
    %v473 = vpack.c.b16 %v360, %v359
    %v474 = vpack.c.b16 %v362, %v361
    %v475 = vpack.c.b16 %v364, %v363
    %v476 = vpack.c.b16 %v366, %v365
    %v477 = vpack.c.b16 %v368, %v367
    %v478 = vpack.c.b16 %v370, %v369
    %v479 = vpack.c.b16 %v372, %v371
    %v480 = vpack.c.b16 %v374, %v373
    %v481 = vpack.c.b16 %v376, %v375
    %v482 = vpack.c.b16 %v378, %v377
    %v483 = vpack.c.b16 %v380, %v379
    %v484 = vpack.c.b16 %v382, %v381
    %v485 = vpack.c.b16 %v384, %v383
    %v486 = vpack.c.b16 %v386, %v385
    %v487 = vpack.c.b16 %v388, %v387
    %v488 = vpack.c.b16 %v390, %v389
    %v489 = vpack.c.b16 %v392, %v391
    %v490 = vpack.c.b16 %v394, %v393
    %v491 = vpack.c.b16 %v396, %v395
    %v492 = vpack.c.b16 %v398, %v397
    %v493 = vpack.c.b16 %v400, %v399
    %v494 = vpack.c.b16 %v402, %v401
    %v495 = vpack.c.b16 %v404, %v403
    %v496 = vpack.c.b16 %v406, %v405
    %v497 = vpack.c.b16 %v408, %v407
    %v498 = vpack.c.b16 %v410, %v409
    %v499 = vpack.c.b16 %v412, %v411
    %v500 = vpack.c.b16 %v414, %v413
    %v501 = vpack.c.b16 %v416, %v415
    %v502 = vpack.c.b16 %v418, %v417
    %v503 = vpack.c.b16 %v420, %v419
    %v504 = vpack.c.b16 %v422, %v421
    %v505 = vpack.c.b16 %v424, %v423
    %v506 = vpack.c.b16 %v426, %v425
    %v507 = vpack.c.b16 %v428, %v427
    %v508 = vpack.c.b16 %v430, %v429
    %v509 = vpack.c.b16 %v432, %v431
    %v510 = vpack.c.b16 %v434, %v433
    %v511 = vpack.c.b16 %v436, %v435
    %v512 = vpack.c.b16 %v438, %v437
    %v513 = vpack.c.b16 %v440, %v439
    %v514 = vpack.c.b16 %v442, %v441
    %v515 = vpack.c.b16 %v444, %v443
    %v516 = vpack.c.b16 %v446, %v445
    %v517 = vpack.c.b16 %v448, %v447
    %v518 = vpack.c.b16 %v450, %v449
    %v519 = vpack.c.b16 %v452, %v451
    %v520 = vpack.c.b16 %v454, %v453
    %v521 = vpack.c.b16 %v456, %v455
    %v522 = vpack.c.b16 %v458, %v457
    %587 = vmatprep.subr.bf16.mxu0 0
    %588 = vmatpush1.bf16.msra.mxu0 %v459
    %589 = vmatprep.subr.bf16.mxu0 0
    %590 = vmatpush1.bf16.msra.mxu0 %v460
    %591 = vmatprep.subr.bf16.mxu0 0
    %592 = vmatpush1.bf16.msra.mxu0 %v461
    %593 = vmatprep.subr.bf16.mxu0 0
    %594 = vmatpush1.bf16.msra.mxu0 %v462
    %595 = vmatprep.subr.bf16.mxu0 0
    %596 = vmatpush1.bf16.msra.mxu0 %v463
    %597 = vmatprep.subr.bf16.mxu0 0
    %598 = vmatpush1.bf16.msra.mxu0 %v464
    %599 = vmatprep.subr.bf16.mxu0 0
    %600 = vmatpush1.bf16.msra.mxu0 %v465
    %601 = vmatprep.subr.bf16.mxu0 0
    %602 = vmatpush1.bf16.msra.mxu0 %v466
    %603 = vmatprep.subr.bf16.mxu0 0
    %604 = vmatpush1.bf16.msra.mxu0 %v467
    %605 = vmatprep.subr.bf16.mxu0 0
    %606 = vmatpush1.bf16.msra.mxu0 %v468
    %607 = vmatprep.subr.bf16.mxu0 0
    %608 = vmatpush1.bf16.msra.mxu0 %v469
    %609 = vmatprep.subr.bf16.mxu0 0
    %610 = vmatpush1.bf16.msra.mxu0 %v470
    %611 = vmatprep.subr.bf16.mxu0 0
    %612 = vmatpush1.bf16.msra.mxu0 %v471
    %613 = vmatprep.subr.bf16.mxu0 0
    %614 = vmatpush1.bf16.msra.mxu0 %v472
    %615 = vmatprep.subr.bf16.mxu0 0
    %616 = vmatpush1.bf16.msra.mxu0 %v473
    %617 = vmatprep.subr.bf16.mxu0 0
    %618 = vmatpush1.bf16.msra.mxu0 %v474
    %619 = vmatprep.mubr.bf16.mxu0 %v176
    %620 = vmatmul.mubr.bf16.gmra.mrb[0].mxu0 %v168
    %v621 = vpop.f32.mrb[0].mxu0
    %v622 = vadd.f32 %v157, %v621
    %v623 = vpop.f32.mrb[0].mxu0
    %v624 = vpop.f32.mrb[0].mxu0
    %v625 = vpop.f32.mrb[0].mxu0
    %626 = vdwg.mxu0
    %627 = vmatprep.subr.bf16.mxu0 0
    %628 = vmatpush1.bf16.msra.mxu0 %v475
    %629 = vmatprep.subr.bf16.mxu0 0
    %630 = vmatpush1.bf16.msra.mxu0 %v476
    %631 = vmatprep.subr.bf16.mxu0 0
    %632 = vmatpush1.bf16.msra.mxu0 %v477
    %633 = vmatprep.subr.bf16.mxu0 0
    %634 = vmatpush1.bf16.msra.mxu0 %v478
    %635 = vmatprep.subr.bf16.mxu0 0
    %636 = vmatpush1.bf16.msra.mxu0 %v479
    %637 = vmatprep.subr.bf16.mxu0 0
    %638 = vmatpush1.bf16.msra.mxu0 %v480
    %639 = vmatprep.subr.bf16.mxu0 0
    %640 = vmatpush1.bf16.msra.mxu0 %v481
    %641 = vmatprep.subr.bf16.mxu0 0
    %642 = vmatpush1.bf16.msra.mxu0 %v482
    %643 = vmatprep.subr.bf16.mxu0 0
    %644 = vmatpush1.bf16.msra.mxu0 %v483
    %645 = vmatprep.subr.bf16.mxu0 0
    %646 = vmatpush1.bf16.msra.mxu0 %v484
    %647 = vmatprep.subr.bf16.mxu0 0
    %648 = vmatpush1.bf16.msra.mxu0 %v485
    %649 = vmatprep.subr.bf16.mxu0 0
    %650 = vmatpush1.bf16.msra.mxu0 %v486
    %651 = vmatprep.subr.bf16.mxu0 0
    %652 = vmatpush1.bf16.msra.mxu0 %v487
    %653 = vmatprep.subr.bf16.mxu0 0
    %654 = vmatpush1.bf16.msra.mxu0 %v488
    %655 = vmatprep.subr.bf16.mxu0 0
    %656 = vmatpush1.bf16.msra.mxu0 %v489
    %657 = vmatprep.subr.bf16.mxu0 0
    %658 = vmatpush1.bf16.msra.mxu0 %v490
    %659 = vmatprep.mubr.bf16.mxu0 %v177
    %660 = vmatmul.mubr.bf16.gmra.mrb[0].mxu0 %v175
    %v661 = vpop.f32.mrb[0].mxu0
    %v662 = vadd.f32 %v622, %v661
    %v663 = vpop.f32.mrb[0].mxu0
    %v664 = vpop.f32.mrb[0].mxu0
    %v665 = vpop.f32.mrb[0].mxu0
    %666 = vdwg.mxu0
    %667 = vmatprep.subr.bf16.mxu0 0
    %668 = vmatpush1.bf16.msra.mxu0 %v491
    %669 = vmatprep.subr.bf16.mxu0 0
    %670 = vmatpush1.bf16.msra.mxu0 %v492
    %671 = vmatprep.subr.bf16.mxu0 0
    %672 = vmatpush1.bf16.msra.mxu0 %v493
    %673 = vmatprep.subr.bf16.mxu0 0
    %674 = vmatpush1.bf16.msra.mxu0 %v494
    %675 = vmatprep.subr.bf16.mxu0 0
    %676 = vmatpush1.bf16.msra.mxu0 %v495
    %677 = vmatprep.subr.bf16.mxu0 0
    %678 = vmatpush1.bf16.msra.mxu0 %v496
    %679 = vmatprep.subr.bf16.mxu0 0
    %680 = vmatpush1.bf16.msra.mxu0 %v497
    %681 = vmatprep.subr.bf16.mxu0 0
    %682 = vmatpush1.bf16.msra.mxu0 %v498
    %683 = vmatprep.subr.bf16.mxu0 0
    %684 = vmatpush1.bf16.msra.mxu0 %v499
    %685 = vmatprep.subr.bf16.mxu0 0
    %686 = vmatpush1.bf16.msra.mxu0 %v500
    %687 = vmatprep.subr.bf16.mxu0 0
    %688 = vmatpush1.bf16.msra.mxu0 %v501
    %689 = vmatprep.subr.bf16.mxu0 0
    %690 = vmatpush1.bf16.msra.mxu0 %v502
    %691 = vmatprep.subr.bf16.mxu0 0
    %692 = vmatpush1.bf16.msra.mxu0 %v503
    %693 = vmatprep.subr.bf16.mxu0 0
    %694 = vmatpush1.bf16.msra.mxu0 %v504
    %695 = vmatprep.subr.bf16.mxu0 0
    %696 = vmatpush1.bf16.msra.mxu0 %v505
    %697 = vmatprep.subr.bf16.mxu0 0
    %698 = vmatpush1.bf16.msra.mxu0 %v506
    %699 = vmatprep.mubr.bf16.mxu0 %v193
    %700 = vmatmul.mubr.bf16.gmra.mrb[0].mxu0 %v185
    %v701 = vpop.f32.mrb[0].mxu0
    %v702 = vadd.f32 %v662, %v701
    %v703 = vpop.f32.mrb[0].mxu0
    %v704 = vpop.f32.mrb[0].mxu0
    %v705 = vpop.f32.mrb[0].mxu0
    %706 = vdwg.mxu0
    %707 = vmatprep.subr.bf16.mxu0 0
    %708 = vmatpush1.bf16.msra.mxu0 %v507
    %709 = vmatprep.subr.bf16.mxu0 0
    %710 = vmatpush1.bf16.msra.mxu0 %v508
    %711 = vmatprep.subr.bf16.mxu0 0
    %712 = vmatpush1.bf16.msra.mxu0 %v509
    %713 = vmatprep.subr.bf16.mxu0 0
    %714 = vmatpush1.bf16.msra.mxu0 %v510
    %715 = vmatprep.subr.bf16.mxu0 0
    %716 = vmatpush1.bf16.msra.mxu0 %v511
    %717 = vmatprep.subr.bf16.mxu0 0
    %718 = vmatpush1.bf16.msra.mxu0 %v512
    %719 = vmatprep.subr.bf16.mxu0 0
    %720 = vmatpush1.bf16.msra.mxu0 %v513
    %721 = vmatprep.subr.bf16.mxu0 0
    %722 = vmatpush1.bf16.msra.mxu0 %v514
    %723 = vmatprep.subr.bf16.mxu0 0
    %724 = vmatpush1.bf16.msra.mxu0 %v515
    %725 = vmatprep.subr.bf16.mxu0 0
    %726 = vmatpush1.bf16.msra.mxu0 %v516
    %727 = vmatprep.subr.bf16.mxu0 0
    %728 = vmatpush1.bf16.msra.mxu0 %v517
    %729 = vmatprep.subr.bf16.mxu0 0
    %730 = vmatpush1.bf16.msra.mxu0 %v518
    %731 = vmatprep.subr.bf16.mxu0 0
    %732 = vmatpush1.bf16.msra.mxu0 %v519
    %733 = vmatprep.subr.bf16.mxu0 0
    %734 = vmatpush1.bf16.msra.mxu0 %v520
    %735 = vmatprep.subr.bf16.mxu0 0
    %736 = vmatpush1.bf16.msra.mxu0 %v521
    %737 = vmatprep.subr.bf16.mxu0 0
    %738 = vmatpush1.bf16.msra.mxu0 %v522
    %739 = vmatprep.mubr.bf16.mxu0 %v194
    %740 = vmatmul.mubr.bf16.gmra.mrb[0].mxu0 %v192
    %v741 = vpop.f32.mrb[0].mxu0
    %v742 = vadd.f32 %v702, %v741
    %v743 = vpop.f32.mrb[0].mxu0
    %v744 = vpop.f32.mrb[0].mxu0
    %v745 = vpop.f32.mrb[0].mxu0
    %746 = vdwg.mxu0
    %vm747 = vcmp.ge.f32.partialorder %v742, 0.0
    %v748 = vmul.f32 %v742, 0.2
    %v749 = vsel %vm747, %v742, %v748
    %v750 = vpack.c.bf16 %v749, %v749
    %v751 = vld [vmem:[%s3] sm:$0xf]
    %v752 = vld [vmem:[%s3 + $0x4] sm:$0xf]
    %v753 = vld [vmem:[%s3 + $0x8] sm:$0xf]
    %v754 = vld [vmem:[%s3 + $0xc] sm:$0xf]
    %v755 = vld [vmem:[%s3 + $0x10] sm:$0xf]
    %v756 = vld [vmem:[%s3 + $0x14] sm:$0xf]
    %v757 = vld [vmem:[%s3 + $0x18] sm:$0xf]
    %v758 = vld [vmem:[%s3 + $0x1c] sm:$0xf]
    %v759 = vld [vmem:[%s3 + $0x20] sm:$0xf]
    %v760 = vld [vmem:[%s3 + $0x24] sm:$0xf]
    %v761 = vld [vmem:[%s3 + $0x28] sm:$0xf]
    %v762 = vld [vmem:[%s3 + $0x2c] sm:$0xf]
    %v763 = vld [vmem:[%s3 + $0x30] sm:$0xf]
    %v764 = vld [vmem:[%s3 + $0x34] sm:$0xf]
    %v765 = vld [vmem:[%s3 + $0x38] sm:$0xf]
    %v766 = vld [vmem:[%s3 + $0x3c] sm:$0xf]
    %v767 = vld [vmem:[%s4] sm:$0x1]
    %v769 = vlaneseq
    %v770 = vshrl.u32 %v769, 7
    %v771 = vsub.s32 0, %v770
    %v772 = vrot.slane %v767, %v771
    %v790 = vunpack.c.l.b16 %v751
    %v791 = vunpack.c.l.b16 %v752
    %v792 = vunpack.c.l.b16 %v753
    %v793 = vunpack.c.l.b16 %v754
    %v794 = vunpack.c.l.b16 %v755
    %v795 = vunpack.c.l.b16 %v756
    %v796 = vunpack.c.l.b16 %v757
    %v797 = vunpack.c.l.b16 %v758
    %v798 = vunpack.c.l.b16 %v759
    %v799 = vunpack.c.l.b16 %v760
    %v800 = vunpack.c.l.b16 %v761
    %v801 = vunpack.c.l.b16 %v762
    %v802 = vunpack.c.l.b16 %v763
    %v803 = vunpack.c.l.b16 %v764
    %v804 = vunpack.c.l.b16 %v765
    %v805 = vunpack.c.l.b16 %v766
    %v806 = vpack.c.b16 %v791, %v790
    %v807 = vpack.c.b16 %v793, %v792
    %v808 = vpack.c.b16 %v795, %v794
    %v809 = vpack.c.b16 %v797, %v796
    %v810 = vpack.c.b16 %v799, %v798
    %v811 = vpack.c.b16 %v801, %v800
    %v812 = vpack.c.b16 %v803, %v802
    %v813 = vpack.c.b16 %v805, %v804
    %822 = vmatprep.subr.bf16.mxu0 0
    %823 = vmatpush1.bf16.msra.mxu0 %v806
    %824 = vmatprep.subr.bf16.mxu0 0
    %825 = vmatpush1.bf16.msra.mxu0 %v807
    %826 = vmatprep.subr.bf16.mxu0 0
    %827 = vmatpush1.bf16.msra.mxu0 %v808
    %828 = vmatprep.subr.bf16.mxu0 0
    %829 = vmatpush1.bf16.msra.mxu0 %v809
    %830 = vmatprep.subr.bf16.mxu0 0
    %831 = vmatpush1.bf16.msra.mxu0 %v810
    %832 = vmatprep.subr.bf16.mxu0 0
    %833 = vmatpush1.bf16.msra.mxu0 %v811
    %834 = vmatprep.subr.bf16.mxu0 0
    %835 = vmatpush1.bf16.msra.mxu0 %v812
    %836 = vmatprep.subr.bf16.mxu0 0
    %837 = vmatpush1.bf16.msra.mxu0 %v813
    %838 = vmatprep.subr.bf16.mxu0 0
    %839 = vmatpush1.bf16.msra.mxu0 0
    %840 = vmatprep.subr.bf16.mxu0 0
    %841 = vmatpush1.bf16.msra.mxu0 0
    %842 = vmatprep.subr.bf16.mxu0 0
    %843 = vmatpush1.bf16.msra.mxu0 0
    %844 = vmatprep.subr.bf16.mxu0 0
    %845 = vmatpush1.bf16.msra.mxu0 0
    %846 = vmatprep.subr.bf16.mxu0 0
    %847 = vmatpush1.bf16.msra.mxu0 0
    %848 = vmatprep.subr.bf16.mxu0 0
    %849 = vmatpush1.bf16.msra.mxu0 0
    %850 = vmatprep.subr.bf16.mxu0 0
    %851 = vmatpush1.bf16.msra.mxu0 0
    %852 = vmatprep.subr.bf16.mxu0 0
    %853 = vmatpush1.bf16.msra.mxu0 0
    %854 = vmatprep.mubr.bf16.mxu0 0
    %855 = vmatmul.mubr.bf16.gmra.mrb[0].mxu0 %v750
    %v856 = vpop.f32.mrb[0].mxu0
    %v857 = vadd.f32 %v772, %v856
    %v858 = vpop.f32.mrb[0].mxu0
    %v859 = vpop.f32.mrb[0].mxu0
    %v860 = vpop.f32.mrb[0].mxu0
    %861 = vdwg.mxu0
    %vm862 = vcmask 11264
    %863 = vst.msk [vmem:[#allocation2] sm:$0xf] %vm862, %v857
    // Predicated region
    $region22: #{_lambda_.5} parent=1 // pred_check
      _
    $region23: #{_lambda_.5} parent=1 // pred_check_branch
      %865 = sbr.rel (0) target = $region25
    $region24: #{_lambda_.5} parent=1 // pred_region
      %s867 = ssub.s32 64, 64
      %868 = vsyncadd [#allocation3], %s867
      %s870 = sshll.u32 [#allocation2], 4
      %s871 = int_to_ptr.vmem [resolvable:$true] %s870
      %873 = dma.vmem_to_hbm [thread:$0]  %s871, 64, %s5, [#allocation3]
    $region25: #{_lambda_.5} parent=1 // pred_fallthru
      _
    // Predicated region
    $region26: #{_lambda_.5} parent=1 // pred_check
      _
    $region27: #{_lambda_.5} parent=1 // pred_check_branch
      %875 = sbr.rel (0) target = $region29
    $region28: #{_lambda_.5} parent=1 // pred_region
      %876 = dma.done [#allocation3], 64
    $region29: #{_lambda_.5} parent=1 // pred_fallthru
      _
    %877 = vsyncpa [#allocation3], 1

</llo_original>
